<compile_context>
chip_gen: v6e
topology: v6e:2x2x1
jax: 0.10.0
libtpu: 0.0.40
codegen_flags: <defaults>
</compile_context>

<pallas_src>
import functools

import numpy as np

import jax
import jax.numpy as jnp
from jax.experimental import pallas as pl
from jax.experimental.pallas import tpu as pltpu

LANE = 128
TILE_M = 256  # dst-node rows per grid step (multiple of 256 for v6e/v7x MXU)


def _round_up(x, m):
    return ((x + m - 1) // m) * m


def _pad_dim(a, axis, size):
    pad = size - a.shape[axis]
    if pad <= 0:
        return a
    widths = [(0, 0)] * a.ndim
    widths[axis] = (0, pad)
    return jnp.pad(a, widths)


def rgcn_layer_kernel(x_ref, adj_ref, invd_ref, wr_ref, wl_ref, b_ref, o_ref,
                      *, n_rels, tile_m, relu):
    """One RelGraphConvLayer on one dst-node tile.

    x_ref:    [N_src, F_in]        source features (resident; f32 or bf16)
    adj_ref:  [R, TILE_M, N_src]   int8 binary adjacency slab (row=dst, col=src)
    invd_ref: [R, TILE_M, 1]       f32, 1 / clamp(in_degree, 1)  (norm='right')
    wr_ref:   [R, F_in, F_out]     bf16 per-relation weights (Linear.weight.T)
    wl_ref:   [F_in, F_out]        bf16 self-loop weights
    b_ref:    [1, F_out]           f32 self-loop bias
    o_ref:    [TILE_M, F_out]      output tile
    """
    i = pl.program_id(0)
    row0 = pl.multiple_of(i * tile_m, tile_m)

    x_src = x_ref[...].astype(jnp.bfloat16)                         # [N, F_in]
    x_dst = x_ref[pl.ds(row0, tile_m), :].astype(jnp.bfloat16)      # [TM, F_in]

    # Self-loop Linear (bias=True), accumulate in f32.
    acc = jnp.dot(x_dst, wl_ref[...],
                  preferred_element_type=jnp.float32) + b_ref[...]

    # HeteroGraphConv(aggregate='sum'): R is small & static -> unroll.
    for r in range(n_rels):
        # int8 -> bf16 upcast rides the VPU (binary entries -> exact).
        a_r = adj_ref[r].astype(jnp.float32).astype(jnp.bfloat16)   # [TM, N]
        ax = jnp.dot(a_r, x_src, preferred_element_type=jnp.float32)
        # norm='right': scale by 1/in_deg in f32 BEFORE the bf16 re-cast
        # (commutes with the @W projection).
        ax = ax * invd_ref[r]
        acc = acc + jnp.dot(ax.astype(jnp.bfloat16), wr_ref[r],
                            preferred_element_type=jnp.float32)

    if relu:
        acc = jnp.maximum(acc, 0.0)
    # TODO(synk): training-mode Dropout(p=0.5) not implemented (eval identity).
    o_ref[...] = acc.astype(o_ref.dtype)


def _rgcn_layer_call(x, adj_i8, invd, wr, wl, b, *, relu, out_dtype, tile_m):
    n_pad, f_in = x.shape
    n_rels = adj_i8.shape[0]
    f_out = wl.shape[1]
    grid_m = n_pad // tile_m
    out_isz = np.dtype(out_dtype).itemsize

    kernel = functools.partial(rgcn_layer_kernel, n_rels=n_rels,
                               tile_m=tile_m, relu=relu)

    # Advisory cost estimate for the XLA scheduler.
    flops = (2 * n_rels * (n_pad * n_pad * f_in + n_pad * f_in * f_out)
             + 2 * n_pad * f_in * f_out)
    bytes_accessed = (adj_i8.size                       # int8 adjacency
                      + invd.size * 4
                      + x.size * x.dtype.itemsize
                      + wr.size * 2 + wl.size * 2 + b.size * 4
                      + n_pad * f_out * out_isz)

    # VMEM budget: double-buffered (adj slab + invd slab + out slab) plus the
    # resident x / weights / bias, with headroom for compiler temporaries.
    slab = (n_rels * tile_m * n_pad * 1
            + n_rels * tile_m * 4
            + tile_m * f_out * out_isz)
    resident = (x.size * x.dtype.itemsize
                + wr.size * 2 + wl.size * 2 + b.size * 4)
    vmem_limit = int(min(128 << 20,
                         max(32 << 20, 2 * slab + resident + (8 << 20))))

    return pl.pallas_call(
        kernel,
        out_shape=jax.ShapeDtypeStruct((n_pad, f_out), out_dtype),
        grid_spec=pltpu.PrefetchScalarGridSpec(
            num_scalar_prefetch=0,
            grid=(grid_m,),
            in_specs=[
                pl.BlockSpec((n_pad, f_in), lambda i: (0, 0)),            # x (resident)
                pl.BlockSpec((n_rels, tile_m, n_pad), lambda i: (0, i, 0)),  # adj slab
                pl.BlockSpec((n_rels, tile_m, 1), lambda i: (0, i, 0)),      # 1/deg slab
                pl.BlockSpec((n_rels, f_in, f_out), lambda i: (0, 0, 0)),    # W_rel
                pl.BlockSpec((f_in, f_out), lambda i: (0, 0)),               # W_loop
                pl.BlockSpec((1, f_out), lambda i: (0, 0)),                  # bias
            ],
            out_specs=pl.BlockSpec((tile_m, f_out), lambda i: (i, 0)),
        ),
        compiler_params=pltpu.CompilerParams(
            dimension_semantics=("parallel",),
            vmem_limit_bytes=vmem_limit,
        ),
        cost_estimate=pl.CostEstimate(flops=int(flops), transcendentals=0,
                                      bytes_accessed=int(bytes_accessed)),
    )(x, adj_i8, invd, wr, wl, b)


def _prep_block(adj, n_pad):
    """adj: [R, N_dst, N_src] binary adjacency (any float dtype).
    Returns (int8 adjacency padded to [R, n_pad, n_pad],
             f32 1/clamp(in_deg,1) padded to [R, n_pad, 1])."""
    adj = adj.astype(jnp.float32)
    deg = jnp.maximum(jnp.sum(adj, axis=-1, keepdims=True), 1.0)
    inv = (1.0 / deg).astype(jnp.float32)
    adj_i8 = _pad_dim(_pad_dim(adj.astype(jnp.int8), 1, n_pad), 2, n_pad)
    inv = _pad_dim(inv, 1, n_pad)          # padded dst rows -> scale 0
    return adj_i8, inv


def entity_classify_forward(params, x, adjs, *, tile_m=TILE_M):
    """EntityClassify.forward for a single node type.

    x:    [N, in_dim] f32 node features.
    adjs: (adj0, adj1) binary relation adjacencies, each [R, N, N]
          (row = destination node, col = source node), one per layer/block.
    """
    adj0, adj1 = adjs
    n, in_dim = x.shape
    h_dim = params["w_loop0"].shape[1]
    out_dim = params["w_loop1"].shape[1]

    n_pad = _round_up(n, tile_m)
    h_pad = _round_up(h_dim, LANE)
    out_pad = _round_up(out_dim, LANE)

    bf = jnp.bfloat16
    # Layer 0 weights: pad F_out (h_dim) to a lane-dense 128.
    wr0 = _pad_dim(params["w_rel0"], 2, h_pad).astype(bf)
    wl0 = _pad_dim(params["w_loop0"], 1, h_pad).astype(bf)
    b0 = _pad_dim(params["b_loop0"], 1, h_pad).astype(jnp.float32)
    # Layer 1 weights: pad F_in (h_dim) rows and F_out (out_dim) cols to 128.
    wr1 = _pad_dim(_pad_dim(params["w_rel1"], 1, h_pad), 2, out_pad).astype(bf)
    wl1 = _pad_dim(_pad_dim(params["w_loop1"], 0, h_pad), 1, out_pad).astype(bf)
    b1 = _pad_dim(params["b_loop1"], 1, out_pad).astype(jnp.float32)

    x_pad = _pad_dim(x.astype(jnp.float32), 0, n_pad)
    adj0_i8, inv0 = _prep_block(adj0, n_pad)
    adj1_i8, inv1 = _prep_block(adj1, n_pad)

    # Layer 0: in_dim -> h_pad, ReLU, dropout (eval identity); lane-dense bf16
    # intermediate round-trips HBM so the two layers' adjacencies are never
    # co-resident in VMEM.
    h = _rgcn_layer_call(x_pad, adj0_i8, inv0, wr0, wl0, b0,
                         relu=True, out_dtype=jnp.bfloat16, tile_m=tile_m)
    # Layer 1: h_pad -> out_pad, no activation.
    out = _rgcn_layer_call(h, adj1_i8, inv1, wr1, wl1, b1,
                           relu=False, out_dtype=jnp.float32, tile_m=tile_m)

    return {"node": out[:n, :out_dim]}


def init_params(key, in_dim, h_dim, out_dim, n_rels):
    """Deterministic synthetic init (shapes match nn.Linear weights, stored
    transposed so y = x @ W)."""
    ks = jax.random.split(key, 8)

    def lin(k, fan_in, fan_out):
        bound = 1.0 / jnp.sqrt(jnp.float32(fan_in))
        return jax.random.uniform(k, (fan_in, fan_out), jnp.float32,
                                  -bound, bound)

    return {
        # layer 0: in_dim -> h_dim
        "w_rel0": jnp.stack([lin(ks[0], in_dim, h_dim),
                             lin(ks[1], in_dim, h_dim)])[:n_rels],
        "w_loop0": lin(ks[2], in_dim, h_dim),
        "b_loop0": jax.random.uniform(ks[3], (1, h_dim), jnp.float32,
                                      -1.0 / jnp.sqrt(jnp.float32(in_dim)),
                                      1.0 / jnp.sqrt(jnp.float32(in_dim))),
        # layer 1: h_dim -> out_dim
        "w_rel1": jnp.stack([lin(ks[4], h_dim, out_dim),
                             lin(ks[5], h_dim, out_dim)])[:n_rels],
        "w_loop1": lin(ks[6], h_dim, out_dim),
        "b_loop1": jax.random.uniform(ks[7], (1, out_dim), jnp.float32,
                                      -1.0 / jnp.sqrt(jnp.float32(h_dim)),
                                      1.0 / jnp.sqrt(jnp.float32(h_dim))),
    }


def entity_classify_reference(params, x, adjs):
    """Pure-jnp f32 reference for correctness check."""
    def layer(adj, xs, w_rel, w_loop, b, relu):
        deg = jnp.maximum(jnp.sum(adj, axis=-1, keepdims=True), 1.0)
        a_hat = adj / deg
        h = xs @ w_loop + b
        h = h + jnp.einsum("rds,sf,rfo->do", a_hat, xs, w_rel)
        return jnp.maximum(h, 0.0) if relu else h

    h = layer(adjs[0], x, params["w_rel0"], params["w_loop0"],
              params["b_loop0"], True)
    h = layer(adjs[1], h, params["w_rel1"], params["w_loop1"],
              params["b_loop1"], False)
    return h


if __name__ == "__main__":
    key = jax.random.PRNGKey(0)
    k_feat, k_adj0, k_adj1, k_param = jax.random.split(key, 4)

    N = 16          # nodes (single node type)
    R = 2           # relation types
    IN_DIM = 32
    H_DIM = 64      # fixed by EntityClassify.__init__
    OUT_DIM = 8

    # Node features.
    x = jax.random.normal(k_feat, (N, IN_DIM), jnp.float32)

    # Two full-graph "blocks" (one per layer), each with R dense relation
    # adjacencies (row = destination node, col = source node).
    adj0 = jax.random.bernoulli(k_adj0, 0.3, (R, N, N)).astype(jnp.float32)
    adj1 = jax.random.bernoulli(k_adj1, 0.3, (R, N, N)).astype(jnp.float32)

    params = init_params(k_param, IN_DIM, H_DIM, OUT_DIM, R)

    out = entity_classify_forward(params, x, (adj0, adj1))
    out_node = jax.block_until_ready(out["node"])

    ref = entity_classify_reference(params, x, (adj0, adj1))
    assert out_node.shape == (N, OUT_DIM)
    max_err = float(jnp.max(jnp.abs(out_node - ref)))
    # bf16 MXU operands with f32 accumulation -> allow small numerical drift.
    assert jnp.allclose(out_node, ref, atol=1e-1, rtol=1e-1), (
        f"max abs err = {max_err}")

    print("KERNEL_OK")
</pallas_src>

<mosaic_0001>
module attributes {stable_mosaic.version = 11 : i64} {
  func.func @rgcn_layer_kernel(%arg0: i32, %arg1: memref<256x32xf32, #tpu.memory_space<vmem>>, %arg2: memref<2x256x256xi8, #tpu.memory_space<vmem>>, %arg3: memref<2x256x1xf32, #tpu.memory_space<vmem>>, %arg4: memref<2x32x128xbf16, #tpu.memory_space<vmem>>, %arg5: memref<32x128xbf16, #tpu.memory_space<vmem>>, %arg6: memref<1x128xf32, #tpu.memory_space<vmem>>, %arg7: memref<256x128xbf16, #tpu.memory_space<vmem>>) attributes {dimension_semantics = [#tpu.dimension_semantics<parallel>], iteration_bounds = array<i64: 1>, scalar_prefetch = 0 : i64, scratch_operands = 0 : i64, tpu.core_type = #tpu.core_type<tc>, window_params = [{pipeline_mode = #tpu.pipeline_mode<synchronous>, transform_indices = @transform_0, window_bounds = array<i64: 256, 32>}, {transform_indices = @transform_1, window_bounds = array<i64: 2, 256, 256>}, {transform_indices = @transform_2, window_bounds = array<i64: 2, 256, 1>}, {pipeline_mode = #tpu.pipeline_mode<synchronous>, transform_indices = @transform_3, window_bounds = array<i64: 2, 32, 128>}, {pipeline_mode = #tpu.pipeline_mode<synchronous>, transform_indices = @transform_4, window_bounds = array<i64: 32, 128>}, {pipeline_mode = #tpu.pipeline_mode<synchronous>, transform_indices = @transform_5, window_bounds = array<i64: 1, 128>}, {transform_indices = @transform_6, window_bounds = array<i64: 256, 128>}]} {
    %c256_i32 = arith.constant 256 : i32
    %0 = arith.muli %arg0, %c256_i32 : i32
    %1 = tpu.assume_multiple %0, 256 : i32
    %c0 = arith.constant 0 : index
    %c0_0 = arith.constant 0 : index
    %2 = vector.load %arg1[%c0, %c0_0] : memref<256x32xf32, #tpu.memory_space<vmem>>, vector<256x32xf32>
    %3 = arith.truncf %2 : vector<256x32xf32> to vector<256x32xbf16>
    %4 = arith.index_cast %1 : i32 to index
    %c0_1 = arith.constant 0 : index
    %5 = vector.load %arg1[%4, %c0_1] : memref<256x32xf32, #tpu.memory_space<vmem>>, vector<256x32xf32>
    %6 = arith.truncf %5 : vector<256x32xf32> to vector<256x32xbf16>
    %c0_2 = arith.constant 0 : index
    %c0_3 = arith.constant 0 : index
    %7 = vector.load %arg5[%c0_2, %c0_3] : memref<32x128xbf16, #tpu.memory_space<vmem>>, vector<32x128xbf16>
    %cst = arith.constant dense<0.000000e+00> : vector<256x128xf32>
    %8 = tpu.matmul %6, %7, %cst {dimension_numbers = #tpu.dot_dimension_numbers<[1], [0], [0], [1], [0, 0, 1, 1], [], []>} : vector<256x32xbf16>, vector<32x128xbf16>, vector<256x128xf32> -> vector<256x128xf32>
    %c0_4 = arith.constant 0 : index
    %c0_5 = arith.constant 0 : index
    %9 = vector.load %arg6[%c0_4, %c0_5] : memref<1x128xf32, #tpu.memory_space<vmem>>, vector<1x128xf32>
    %10 = vector.broadcast %9 : vector<1x128xf32> to vector<256x128xf32>
    %11 = arith.addf %8, %10 : vector<256x128xf32>
    %c0_6 = arith.constant 0 : index
    %c0_7 = arith.constant 0 : index
    %c0_8 = arith.constant 0 : index
    %12 = vector.load %arg2[%c0_6, %c0_7, %c0_8] : memref<2x256x256xi8, #tpu.memory_space<vmem>>, vector<1x256x256xi8>
    %13 = vector.shape_cast %12 : vector<1x256x256xi8> to vector<256x256xi8>
    %14 = arith.sitofp %13 : vector<256x256xi8> to vector<256x256xf32>
    %15 = arith.truncf %14 : vector<256x256xf32> to vector<256x256xbf16>
    %cst_9 = arith.constant dense<0.000000e+00> : vector<256x32xf32>
    %16 = tpu.matmul %15, %3, %cst_9 {dimension_numbers = #tpu.dot_dimension_numbers<[1], [0], [0], [1], [0, 0, 1, 1], [], []>} : vector<256x256xbf16>, vector<256x32xbf16>, vector<256x32xf32> -> vector<256x32xf32>
    %c0_10 = arith.constant 0 : index
    %c0_11 = arith.constant 0 : index
    %c0_12 = arith.constant 0 : index
    %17 = vector.load %arg3[%c0_10, %c0_11, %c0_12] : memref<2x256x1xf32, #tpu.memory_space<vmem>>, vector<1x256x1xf32>
    %18 = vector.shape_cast %17 : vector<1x256x1xf32> to vector<256x1xf32>
    %19 = vector.broadcast %18 : vector<256x1xf32> to vector<256x32xf32>
    %20 = arith.mulf %16, %19 : vector<256x32xf32>
    %21 = arith.truncf %20 : vector<256x32xf32> to vector<256x32xbf16>
    %c0_13 = arith.constant 0 : index
    %c0_14 = arith.constant 0 : index
    %c0_15 = arith.constant 0 : index
    %22 = vector.load %arg4[%c0_13, %c0_14, %c0_15] : memref<2x32x128xbf16, #tpu.memory_space<vmem>>, vector<1x32x128xbf16>
    %23 = vector.shape_cast %22 : vector<1x32x128xbf16> to vector<32x128xbf16>
    %cst_16 = arith.constant dense<0.000000e+00> : vector<256x128xf32>
    %24 = tpu.matmul %21, %23, %cst_16 {dimension_numbers = #tpu.dot_dimension_numbers<[1], [0], [0], [1], [0, 0, 1, 1], [], []>} : vector<256x32xbf16>, vector<32x128xbf16>, vector<256x128xf32> -> vector<256x128xf32>
    %25 = arith.addf %11, %24 : vector<256x128xf32>
    %c1 = arith.constant 1 : index
    %c0_17 = arith.constant 0 : index
    %c0_18 = arith.constant 0 : index
    %26 = vector.load %arg2[%c1, %c0_17, %c0_18] : memref<2x256x256xi8, #tpu.memory_space<vmem>>, vector<1x256x256xi8>
    %27 = vector.shape_cast %26 : vector<1x256x256xi8> to vector<256x256xi8>
    %28 = arith.sitofp %27 : vector<256x256xi8> to vector<256x256xf32>
    %29 = arith.truncf %28 : vector<256x256xf32> to vector<256x256xbf16>
    %cst_19 = arith.constant dense<0.000000e+00> : vector<256x32xf32>
    %30 = tpu.matmul %29, %3, %cst_19 {dimension_numbers = #tpu.dot_dimension_numbers<[1], [0], [0], [1], [0, 0, 1, 1], [], []>} : vector<256x256xbf16>, vector<256x32xbf16>, vector<256x32xf32> -> vector<256x32xf32>
    %c1_20 = arith.constant 1 : index
    %c0_21 = arith.constant 0 : index
    %c0_22 = arith.constant 0 : index
    %31 = vector.load %arg3[%c1_20, %c0_21, %c0_22] : memref<2x256x1xf32, #tpu.memory_space<vmem>>, vector<1x256x1xf32>
    %32 = vector.shape_cast %31 : vector<1x256x1xf32> to vector<256x1xf32>
    %33 = vector.broadcast %32 : vector<256x1xf32> to vector<256x32xf32>
    %34 = arith.mulf %30, %33 : vector<256x32xf32>
    %35 = arith.truncf %34 : vector<256x32xf32> to vector<256x32xbf16>
    %c1_23 = arith.constant 1 : index
    %c0_24 = arith.constant 0 : index
    %c0_25 = arith.constant 0 : index
    %36 = vector.load %arg4[%c1_23, %c0_24, %c0_25] : memref<2x32x128xbf16, #tpu.memory_space<vmem>>, vector<1x32x128xbf16>
    %37 = vector.shape_cast %36 : vector<1x32x128xbf16> to vector<32x128xbf16>
    %cst_26 = arith.constant dense<0.000000e+00> : vector<256x128xf32>
    %38 = tpu.matmul %35, %37, %cst_26 {dimension_numbers = #tpu.dot_dimension_numbers<[1], [0], [0], [1], [0, 0, 1, 1], [], []>} : vector<256x32xbf16>, vector<32x128xbf16>, vector<256x128xf32> -> vector<256x128xf32>
    %39 = arith.addf %25, %38 : vector<256x128xf32>
    %cst_27 = arith.constant 0.000000e+00 : f32
    %40 = vector.broadcast %cst_27 : f32 to vector<256x128xf32>
    %41 = arith.maximumf %39, %40 : vector<256x128xf32>
    %42 = arith.truncf %41 : vector<256x128xf32> to vector<256x128xbf16>
    %c0_28 = arith.constant 0 : index
    %c0_29 = arith.constant 0 : index
    %43 = vector.load %arg7[%c0_28, %c0_29] : memref<256x128xbf16, #tpu.memory_space<vmem>>, vector<256x128xbf16>
    tpu.vector_store %arg7[%c0_28, %c0_29], %42 {strides = array<i32>} : memref<256x128xbf16, #tpu.memory_space<vmem>>, vector<256x128xbf16>,
    return
  }
  func.func @transform_0(%arg0: i32) -> (i32, i32) {
    %c0_i32 = arith.constant 0 : i32
    %c0_i32_0 = arith.constant 0 : i32
    %c0_i32_1 = arith.constant 0 : i32
    return %c0_i32, %c0_i32_0 : i32, i32
  }
  func.func @transform_1(%arg0: i32) -> (i32, i32, i32) {
    %c0_i32 = arith.constant 0 : i32
    %c0_i32_0 = arith.constant 0 : i32
    %c0_i32_1 = arith.constant 0 : i32
    return %c0_i32, %arg0, %c0_i32_0 : i32, i32, i32
  }
  func.func @transform_2(%arg0: i32) -> (i32, i32, i32) {
    %c0_i32 = arith.constant 0 : i32
    %c0_i32_0 = arith.constant 0 : i32
    %c0_i32_1 = arith.constant 0 : i32
    return %c0_i32, %arg0, %c0_i32_0 : i32, i32, i32
  }
  func.func @transform_3(%arg0: i32) -> (i32, i32, i32) {
    %c0_i32 = arith.constant 0 : i32
    %c0_i32_0 = arith.constant 0 : i32
    %c0_i32_1 = arith.constant 0 : i32
    %c0_i32_2 = arith.constant 0 : i32
    return %c0_i32, %c0_i32_0, %c0_i32_1 : i32, i32, i32
  }
  func.func @transform_4(%arg0: i32) -> (i32, i32) {
    %c0_i32 = arith.constant 0 : i32
    %c0_i32_0 = arith.constant 0 : i32
    %c0_i32_1 = arith.constant 0 : i32
    return %c0_i32, %c0_i32_0 : i32, i32
  }
  func.func @transform_5(%arg0: i32) -> (i32, i32) {
    %c0_i32 = arith.constant 0 : i32
    %c0_i32_0 = arith.constant 0 : i32
    %c0_i32_1 = arith.constant 0 : i32
    return %c0_i32, %c0_i32_0 : i32, i32
  }
  func.func @transform_6(%arg0: i32) -> (i32, i32) {
    %c0_i32 = arith.constant 0 : i32
    %c0_i32_0 = arith.constant 0 : i32
    return %arg0, %c0_i32 : i32, i32
  }
}

</mosaic_0001>

<llo_original>
// kernel: tpu_custom_call.1
$region0: #{tpu_custom_call.1}
  #allocation0 [shape = 'u32[]', space=smem, size = 0x4, offset = 0x4, fixed_abs, tag = 'smem constant byte address 0x4 - core index']
  #allocation1 [shape = 'u32[144,128]{1,0:T(1,128)}', space=vmem, size = 0x12000, scoped, tag = 'internal scratch']
  %s0 = inlined_call_operand.vmem [shape: f32[256,32], index: 0, kind: input, shape index: {}]
  %s1 = inlined_call_operand.vmem [shape: s8[2,256,256], index: 1, kind: input, shape index: {}]
  %s2 = inlined_call_operand.vmem [shape: f32[2,256,1], index: 2, kind: input, shape index: {}]
  %s3 = inlined_call_operand.vmem [shape: bf16[2,32,128], index: 3, kind: input, shape index: {}]
  %s4 = inlined_call_operand.vmem [shape: bf16[32,128], index: 4, kind: input, shape index: {}]
  %s5 = inlined_call_operand.vmem [shape: f32[1,128], index: 5, kind: input, shape index: {}]
  %s6 = inlined_call_operand.hbm [shape: bf16[256,128], index: 6, kind: output, shape index: {}]
  %s7 = sld [smem:[#allocation0]]
  $region34: #{tpu_custom_call.1} parent=0
    _
  %s9 = ssub.s32 1, %s7
  %s10 = scalar_select 0, %s9, %s7
  $region1: #{tpu_custom_call.1} parent=0
    #allocation2 [shape = 'u8[65536]{0}', space=vmem, size = 0x10000, scoped, tag = 'output window, operand 0, single buffered']
    #allocation3 [shape = 's32[1]{0}', space=sflag, size = 0x4, scoped, tag = 'scoped memory for tpu_custom_call.1']
    %11 = vsyncpa [#allocation3], 0
    // Predicated region
    $region2: #{tpu_custom_call.1} parent=1 // pred_check
      _
    $region3: #{tpu_custom_call.1} parent=1 // pred_check_branch
      %13 = sbr.rel (0) target = $region5
    $region4: #{tpu_custom_call.1} parent=1 // pred_region
      _
    $region5: #{tpu_custom_call.1} parent=1 // pred_fallthru
      _
    // Predicated region
    $region6: #{tpu_custom_call.1} parent=1 // pred_check
      _
    $region7: #{tpu_custom_call.1} parent=1 // pred_check_branch
      %15 = sbr.rel (0) target = $region9
    $region8: #{tpu_custom_call.1} parent=1 // pred_region
      _
    $region9: #{tpu_custom_call.1} parent=1 // pred_fallthru
      _
    // Predicated region
    $region10: #{tpu_custom_call.1} parent=1 // pred_check
      _
    $region11: #{tpu_custom_call.1} parent=1 // pred_check_branch
      %17 = sbr.rel (0) target = $region13
    $region12: #{tpu_custom_call.1} parent=1 // pred_region
      _
    $region13: #{tpu_custom_call.1} parent=1 // pred_fallthru
      _
    // Predicated region
    $region14: #{tpu_custom_call.1} parent=1 // pred_check
      _
    $region15: #{tpu_custom_call.1} parent=1 // pred_check_branch
      %19 = sbr.rel (0) target = $region17
    $region16: #{tpu_custom_call.1} parent=1 // pred_region
      _
    $region17: #{tpu_custom_call.1} parent=1 // pred_fallthru
      _
    // Predicated region
    $region18: #{tpu_custom_call.1} parent=1 // pred_check
      _
    $region19: #{tpu_custom_call.1} parent=1 // pred_check_branch
      %21 = sbr.rel (0) target = $region21
    $region20: #{tpu_custom_call.1} parent=1 // pred_region
      _
    $region21: #{tpu_custom_call.1} parent=1 // pred_fallthru
      _
    // Predicated region
    $region22: #{tpu_custom_call.1} parent=1 // pred_check
      _
    $region23: #{tpu_custom_call.1} parent=1 // pred_check_branch
      %23 = sbr.rel (0) target = $region25
    $region24: #{tpu_custom_call.1} parent=1 // pred_region
      _
    $region25: #{tpu_custom_call.1} parent=1 // pred_fallthru
      _
    %s25 = smul.u32 0, 256
    %v26 = vld [vmem:[%s0] sm:$0xff]
    %v27 = vld [vmem:[%s0 + $0x8] sm:$0xff]
    %v28 = vld [vmem:[%s0 + $0x10] sm:$0xff]
    %v29 = vld [vmem:[%s0 + $0x18] sm:$0xff]
    %v30 = vld [vmem:[%s0 + $0x20] sm:$0xff]
    %v31 = vld [vmem:[%s0 + $0x28] sm:$0xff]
    %v32 = vld [vmem:[%s0 + $0x30] sm:$0xff]
    %v33 = vld [vmem:[%s0 + $0x38] sm:$0xff]
    %v34 = vld [vmem:[%s0 + $0x40] sm:$0xff]
    %v35 = vld [vmem:[%s0 + $0x48] sm:$0xff]
    %v36 = vld [vmem:[%s0 + $0x50] sm:$0xff]
    %v37 = vld [vmem:[%s0 + $0x58] sm:$0xff]
    %v38 = vld [vmem:[%s0 + $0x60] sm:$0xff]
    %v39 = vld [vmem:[%s0 + $0x68] sm:$0xff]
    %v40 = vld [vmem:[%s0 + $0x70] sm:$0xff]
    %v41 = vld [vmem:[%s0 + $0x78] sm:$0xff]
    %v42 = vld [vmem:[%s0 + $0x80] sm:$0xff]
    %v43 = vld [vmem:[%s0 + $0x88] sm:$0xff]
    %v44 = vld [vmem:[%s0 + $0x90] sm:$0xff]
    %v45 = vld [vmem:[%s0 + $0x98] sm:$0xff]
    %v46 = vld [vmem:[%s0 + $0xa0] sm:$0xff]
    %v47 = vld [vmem:[%s0 + $0xa8] sm:$0xff]
    %v48 = vld [vmem:[%s0 + $0xb0] sm:$0xff]
    %v49 = vld [vmem:[%s0 + $0xb8] sm:$0xff]
    %v50 = vld [vmem:[%s0 + $0xc0] sm:$0xff]
    %v51 = vld [vmem:[%s0 + $0xc8] sm:$0xff]
    %v52 = vld [vmem:[%s0 + $0xd0] sm:$0xff]
    %v53 = vld [vmem:[%s0 + $0xd8] sm:$0xff]
    %v54 = vld [vmem:[%s0 + $0xe0] sm:$0xff]
    %v55 = vld [vmem:[%s0 + $0xe8] sm:$0xff]
    %v56 = vld [vmem:[%s0 + $0xf0] sm:$0xff]
    %v57 = vld [vmem:[%s0 + $0xf8] sm:$0xff]
    %v58 = vpack.c.bf16 %v27, %v26
    %v59 = vpack.c.bf16 %v29, %v28
    %v60 = vpack.c.bf16 %v31, %v30
    %v61 = vpack.c.bf16 %v33, %v32
    %v62 = vpack.c.bf16 %v35, %v34
    %v63 = vpack.c.bf16 %v37, %v36
    %v64 = vpack.c.bf16 %v39, %v38
    %v65 = vpack.c.bf16 %v41, %v40
    %v66 = vpack.c.bf16 %v43, %v42
    %v67 = vpack.c.bf16 %v45, %v44
    %v68 = vpack.c.bf16 %v47, %v46
    %v69 = vpack.c.bf16 %v49, %v48
    %v70 = vpack.c.bf16 %v51, %v50
    %v71 = vpack.c.bf16 %v53, %v52
    %v72 = vpack.c.bf16 %v55, %v54
    %v73 = vpack.c.bf16 %v57, %v56
    %s74 = scalar_lea.vmem %s0, %s25
    %v75 = vld [vmem:[%s74] sm:$0xff]
    %v76 = vld [vmem:[%s74 + $0x8] sm:$0xff]
    %v77 = vld [vmem:[%s74 + $0x10] sm:$0xff]
    %v78 = vld [vmem:[%s74 + $0x18] sm:$0xff]
    %v79 = vld [vmem:[%s74 + $0x20] sm:$0xff]
    %v80 = vld [vmem:[%s74 + $0x28] sm:$0xff]
    %v81 = vld [vmem:[%s74 + $0x30] sm:$0xff]
    %v82 = vld [vmem:[%s74 + $0x38] sm:$0xff]
    %v83 = vld [vmem:[%s74 + $0x40] sm:$0xff]
    %v84 = vld [vmem:[%s74 + $0x48] sm:$0xff]
    %v85 = vld [vmem:[%s74 + $0x50] sm:$0xff]
    %v86 = vld [vmem:[%s74 + $0x58] sm:$0xff]
    %v87 = vld [vmem:[%s74 + $0x60] sm:$0xff]
    %v88 = vld [vmem:[%s74 + $0x68] sm:$0xff]
    %v89 = vld [vmem:[%s74 + $0x70] sm:$0xff]
    %v90 = vld [vmem:[%s74 + $0x78] sm:$0xff]
    %v91 = vld [vmem:[%s74 + $0x80] sm:$0xff]
    %v92 = vld [vmem:[%s74 + $0x88] sm:$0xff]
    %v93 = vld [vmem:[%s74 + $0x90] sm:$0xff]
    %v94 = vld [vmem:[%s74 + $0x98] sm:$0xff]
    %v95 = vld [vmem:[%s74 + $0xa0] sm:$0xff]
    %v96 = vld [vmem:[%s74 + $0xa8] sm:$0xff]
    %v97 = vld [vmem:[%s74 + $0xb0] sm:$0xff]
    %v98 = vld [vmem:[%s74 + $0xb8] sm:$0xff]
    %v99 = vld [vmem:[%s74 + $0xc0] sm:$0xff]
    %v100 = vld [vmem:[%s74 + $0xc8] sm:$0xff]
    %v101 = vld [vmem:[%s74 + $0xd0] sm:$0xff]
    %v102 = vld [vmem:[%s74 + $0xd8] sm:$0xff]
    %v103 = vld [vmem:[%s74 + $0xe0] sm:$0xff]
    %v104 = vld [vmem:[%s74 + $0xe8] sm:$0xff]
    %v105 = vld [vmem:[%s74 + $0xf0] sm:$0xff]
    %v106 = vld [vmem:[%s74 + $0xf8] sm:$0xff]
    %v107 = vpack.c.bf16 %v76, %v75
    %v108 = vpack.c.bf16 %v78, %v77
    %v109 = vpack.c.bf16 %v80, %v79
    %v110 = vpack.c.bf16 %v82, %v81
    %v111 = vpack.c.bf16 %v84, %v83
    %v112 = vpack.c.bf16 %v86, %v85
    %v113 = vpack.c.bf16 %v88, %v87
    %v114 = vpack.c.bf16 %v90, %v89
    %v115 = vpack.c.bf16 %v92, %v91
    %v116 = vpack.c.bf16 %v94, %v93
    %v117 = vpack.c.bf16 %v96, %v95
    %v118 = vpack.c.bf16 %v98, %v97
    %v119 = vpack.c.bf16 %v100, %v99
    %v120 = vpack.c.bf16 %v102, %v101
    %v121 = vpack.c.bf16 %v104, %v103
    %v122 = vpack.c.bf16 %v106, %v105
    %v123 = vld [vmem:[%s4] sm:$0xf]
    %v124 = vld [vmem:[%s4 + $0x4] sm:$0xf]
    %v125 = vld [vmem:[%s4 + $0x8] sm:$0xf]
    %v126 = vld [vmem:[%s4 + $0xc] sm:$0xf]
    %v127 = vld [vmem:[%s5] sm:$0x1]
    %v129 = vlaneseq
    %v130 = vshrl.u32 %v129, 7
    %v131 = vsub.s32 0, %v130
    %v132 = vrot.slane %v127, %v131
    %v138 = vunpack.c.l.b16 %v123
    %v139 = vunpack.c.l.b16 %v124
    %v140 = vunpack.c.l.b16 %v125
    %v141 = vunpack.c.l.b16 %v126
    %v142 = vpack.c.b16 %v139, %v138
    %v143 = vpack.c.b16 %v141, %v140
    %vm146 = vcmask 261120
    %v148 = vsel %vm146, %v107, 0
    %v151 = vsel %vm146, %v108, 0
    %v154 = vsel %vm146, %v109, 0
    %v157 = vsel %vm146, %v110, 0
    %v160 = vsel %vm146, %v111, 0
    %v163 = vsel %vm146, %v112, 0
    %v166 = vsel %vm146, %v113, 0
    %v169 = vsel %vm146, %v114, 0
    %v172 = vsel %vm146, %v115, 0
    %v175 = vsel %vm146, %v116, 0
    %v178 = vsel %vm146, %v117, 0
    %v181 = vsel %vm146, %v118, 0
    %v184 = vsel %vm146, %v119, 0
    %v187 = vsel %vm146, %v120, 0
    %v190 = vsel %vm146, %v121, 0
    %v193 = vsel %vm146, %v122, 0
    %195 = vmatprep.subr.bf16.mxu0 0
    %196 = vmatpush1.bf16.msra.mxu0 0
    %197 = vmatprep.subr.bf16.mxu0 0
    %198 = vmatpush1.bf16.msra.mxu0 0
    %199 = vmatprep.subr.bf16.mxu0 0
    %200 = vmatpush1.bf16.msra.mxu0 0
    %201 = vmatprep.subr.bf16.mxu0 0
    %202 = vmatpush1.bf16.msra.mxu0 0
    %203 = vmatprep.subr.bf16.mxu0 0
    %204 = vmatpush1.bf16.msra.mxu0 0
    %205 = vmatprep.subr.bf16.mxu0 0
    %206 = vmatpush1.bf16.msra.mxu0 0
    %207 = vmatprep.subr.bf16.mxu0 0
    %208 = vmatpush1.bf16.msra.mxu0 %v143
    %209 = vmatprep.subr.bf16.mxu0 0
    %210 = vmatpush1.bf16.msra.mxu0 %v142
    %211 = vmatprep.subr.bf16.mxu0 0
    %212 = vmatpush2.bf16.msra.mxu0 0
    %213 = vmatprep.subr.bf16.mxu0 0
    %214 = vmatpush2.bf16.msra.mxu0 0
    %215 = vmatprep.subr.bf16.mxu0 0
    %216 = vmatpush2.bf16.msra.mxu0 0
    %217 = vmatprep.subr.bf16.mxu0 0
    %218 = vmatpush2.bf16.msra.mxu0 0
    %219 = vmatprep.subr.bf16.mxu0 0
    %220 = vmatpush2.bf16.msra.mxu0 0
    %221 = vmatprep.subr.bf16.mxu0 0
    %222 = vmatpush2.bf16.msra.mxu0 0
    %223 = vmatprep.subr.bf16.mxu0 0
    %224 = vmatpush2.bf16.msra.mxu0 0
    %225 = vmatprep.subr.bf16.mxu0 0
    %226 = vmatpush2.bf16.msra.mxu0 0
    %227 = vmatprep.mubr.bf16.mxu0 0
    %228 = vmatmul.mubr.bf16.gmra.mxu0 %v148
    %v229 = vpop.f32.mrf.mxu0
    %v230 = vadd.f32 %v132, %v229
    %v231 = vpop.f32.mrf.mxu0
    %v232 = vpop.f32.mrf.mxu0
    %v233 = vadd.f32 %v132, %v232
    %v234 = vpop.f32.mrf.mxu0
    %235 = vmatprep.mubr.bf16.mxu0 0
    %236 = vmatmul.mubr.bf16.gmra.mxu0 %v151
    %v237 = vpop.f32.mrf.mxu0
    %v238 = vadd.f32 %v132, %v237
    %v239 = vpop.f32.mrf.mxu0
    %v240 = vpop.f32.mrf.mxu0
    %v241 = vadd.f32 %v132, %v240
    %v242 = vpop.f32.mrf.mxu0
    %243 = vmatprep.mubr.bf16.mxu0 0
    %244 = vmatmul.mubr.bf16.gmra.mxu0 %v154
    %v245 = vpop.f32.mrf.mxu0
    %v246 = vadd.f32 %v132, %v245
    %v247 = vpop.f32.mrf.mxu0
    %v248 = vpop.f32.mrf.mxu0
    %v249 = vadd.f32 %v132, %v248
    %v250 = vpop.f32.mrf.mxu0
    %251 = vmatprep.mubr.bf16.mxu0 0
    %252 = vmatmul.mubr.bf16.gmra.mxu0 %v157
    %v253 = vpop.f32.mrf.mxu0
    %v254 = vadd.f32 %v132, %v253
    %v255 = vpop.f32.mrf.mxu0
    %v256 = vpop.f32.mrf.mxu0
    %v257 = vadd.f32 %v132, %v256
    %v258 = vpop.f32.mrf.mxu0
    %259 = vmatprep.mubr.bf16.mxu0 0
    %260 = vmatmul.mubr.bf16.gmra.mxu0 %v160
    %v261 = vpop.f32.mrf.mxu0
    %v262 = vadd.f32 %v132, %v261
    %v263 = vpop.f32.mrf.mxu0
    %v264 = vpop.f32.mrf.mxu0
    %v265 = vadd.f32 %v132, %v264
    %v266 = vpop.f32.mrf.mxu0
    %267 = vmatprep.mubr.bf16.mxu0 0
    %268 = vmatmul.mubr.bf16.gmra.mxu0 %v163
    %v269 = vpop.f32.mrf.mxu0
    %v270 = vadd.f32 %v132, %v269
    %v271 = vpop.f32.mrf.mxu0
    %v272 = vpop.f32.mrf.mxu0
    %v273 = vadd.f32 %v132, %v272
    %v274 = vpop.f32.mrf.mxu0
    %275 = vmatprep.mubr.bf16.mxu0 0
    %276 = vmatmul.mubr.bf16.gmra.mxu0 %v166
    %v277 = vpop.f32.mrf.mxu0
    %v278 = vadd.f32 %v132, %v277
    %v279 = vpop.f32.mrf.mxu0
    %v280 = vpop.f32.mrf.mxu0
    %v281 = vadd.f32 %v132, %v280
    %v282 = vpop.f32.mrf.mxu0
    %283 = vmatprep.mubr.bf16.mxu0 0
    %284 = vmatmul.mubr.bf16.gmra.mxu0 %v169
    %v285 = vpop.f32.mrf.mxu0
    %v286 = vadd.f32 %v132, %v285
    %v287 = vpop.f32.mrf.mxu0
    %v288 = vpop.f32.mrf.mxu0
    %v289 = vadd.f32 %v132, %v288
    %v290 = vpop.f32.mrf.mxu0
    %291 = vmatprep.mubr.bf16.mxu0 0
    %292 = vmatmul.mubr.bf16.gmra.mxu0 %v172
    %v293 = vpop.f32.mrf.mxu0
    %v294 = vadd.f32 %v132, %v293
    %v295 = vpop.f32.mrf.mxu0
    %v296 = vpop.f32.mrf.mxu0
    %v297 = vadd.f32 %v132, %v296
    %v298 = vpop.f32.mrf.mxu0
    %299 = vmatprep.mubr.bf16.mxu0 0
    %300 = vmatmul.mubr.bf16.gmra.mxu0 %v175
    %v301 = vpop.f32.mrf.mxu0
    %v302 = vadd.f32 %v132, %v301
    %v303 = vpop.f32.mrf.mxu0
    %v304 = vpop.f32.mrf.mxu0
    %v305 = vadd.f32 %v132, %v304
    %v306 = vpop.f32.mrf.mxu0
    %307 = vmatprep.mubr.bf16.mxu0 0
    %308 = vmatmul.mubr.bf16.gmra.mxu0 %v178
    %v309 = vpop.f32.mrf.mxu0
    %v310 = vadd.f32 %v132, %v309
    %v311 = vpop.f32.mrf.mxu0
    %v312 = vpop.f32.mrf.mxu0
    %v313 = vadd.f32 %v132, %v312
    %v314 = vpop.f32.mrf.mxu0
    %315 = vmatprep.mubr.bf16.mxu0 0
    %316 = vmatmul.mubr.bf16.gmra.mxu0 %v181
    %v317 = vpop.f32.mrf.mxu0
    %v318 = vadd.f32 %v132, %v317
    %v319 = vpop.f32.mrf.mxu0
    %v320 = vpop.f32.mrf.mxu0
    %v321 = vadd.f32 %v132, %v320
    %v322 = vpop.f32.mrf.mxu0
    %323 = vmatprep.mubr.bf16.mxu0 0
    %324 = vmatmul.mubr.bf16.gmra.mxu0 %v184
    %v325 = vpop.f32.mrf.mxu0
    %v326 = vadd.f32 %v132, %v325
    %v327 = vpop.f32.mrf.mxu0
    %v328 = vpop.f32.mrf.mxu0
    %v329 = vadd.f32 %v132, %v328
    %v330 = vpop.f32.mrf.mxu0
    %331 = vmatprep.mubr.bf16.mxu0 0
    %332 = vmatmul.mubr.bf16.gmra.mxu0 %v187
    %v333 = vpop.f32.mrf.mxu0
    %v334 = vadd.f32 %v132, %v333
    %v335 = vpop.f32.mrf.mxu0
    %v336 = vpop.f32.mrf.mxu0
    %v337 = vadd.f32 %v132, %v336
    %v338 = vpop.f32.mrf.mxu0
    %339 = vmatprep.mubr.bf16.mxu0 0
    %340 = vmatmul.mubr.bf16.gmra.mxu0 %v190
    %v341 = vpop.f32.mrf.mxu0
    %v342 = vadd.f32 %v132, %v341
    %v343 = vpop.f32.mrf.mxu0
    %v344 = vpop.f32.mrf.mxu0
    %v345 = vadd.f32 %v132, %v344
    %v346 = vpop.f32.mrf.mxu0
    %347 = vmatprep.mubr.bf16.mxu0 0
    %348 = vmatmul.mubr.bf16.gmra.mxu0 %v193
    %v349 = vpop.f32.mrf.mxu0
    %v350 = vadd.f32 %v132, %v349
    %v351 = vpop.f32.mrf.mxu0
    %v352 = vpop.f32.mrf.mxu0
    %v353 = vadd.f32 %v132, %v352
    %v354 = vpop.f32.mrf.mxu0
    %355 = vdwg.mxu0
    %v356 = vld [vmem:[%s1] sm:$0xff]
    %v357 = vld [vmem:[%s1 + $0x8] sm:$0xff]
    %v358 = vld [vmem:[%s1 + $0x10] sm:$0xff]
    %v359 = vld [vmem:[%s1 + $0x18] sm:$0xff]
    %v360 = vld [vmem:[%s1 + $0x20] sm:$0xff]
    %v361 = vld [vmem:[%s1 + $0x28] sm:$0xff]
    %v362 = vld [vmem:[%s1 + $0x30] sm:$0xff]
    %v363 = vld [vmem:[%s1 + $0x38] sm:$0xff]
    %v364 = vld [vmem:[%s1 + $0x40] sm:$0xff]
    %v365 = vld [vmem:[%s1 + $0x48] sm:$0xff]
    %v366 = vld [vmem:[%s1 + $0x50] sm:$0xff]
    %v367 = vld [vmem:[%s1 + $0x58] sm:$0xff]
    %v368 = vld [vmem:[%s1 + $0x60] sm:$0xff]
    %v369 = vld [vmem:[%s1 + $0x68] sm:$0xff]
    %v370 = vld [vmem:[%s1 + $0x70] sm:$0xff]
    %v371 = vld [vmem:[%s1 + $0x78] sm:$0xff]
    %v372 = vunpack.c.l.s8.bf16 %v356
    %v373 = vunpack.c.l.s8.bf16 %v357
    %v374 = vunpack.c.h.s8.bf16 %v356
    %v375 = vunpack.c.h.s8.bf16 %v357
    %v376 = vunpack.c.l.s8.bf16 %v358
    %v377 = vunpack.c.l.s8.bf16 %v359
    %v378 = vunpack.c.h.s8.bf16 %v358
    %v379 = vunpack.c.h.s8.bf16 %v359
    %v380 = vunpack.c.l.s8.bf16 %v360
    %v381 = vunpack.c.l.s8.bf16 %v361
    %v382 = vunpack.c.h.s8.bf16 %v360
    %v383 = vunpack.c.h.s8.bf16 %v361
    %v384 = vunpack.c.l.s8.bf16 %v362
    %v385 = vunpack.c.l.s8.bf16 %v363
    %v386 = vunpack.c.h.s8.bf16 %v362
    %v387 = vunpack.c.h.s8.bf16 %v363
    %v388 = vunpack.c.l.s8.bf16 %v364
    %v389 = vunpack.c.l.s8.bf16 %v365
    %v390 = vunpack.c.h.s8.bf16 %v364
    %v391 = vunpack.c.h.s8.bf16 %v365
    %v392 = vunpack.c.l.s8.bf16 %v366
    %v393 = vunpack.c.l.s8.bf16 %v367
    %v394 = vunpack.c.h.s8.bf16 %v366
    %v395 = vunpack.c.h.s8.bf16 %v367
    %v396 = vunpack.c.l.s8.bf16 %v368
    %v397 = vunpack.c.l.s8.bf16 %v369
    %v398 = vunpack.c.h.s8.bf16 %v368
    %v399 = vunpack.c.h.s8.bf16 %v369
    %v400 = vunpack.c.l.s8.bf16 %v370
    %v401 = vunpack.c.l.s8.bf16 %v371
    %v402 = vunpack.c.h.s8.bf16 %v370
    %v403 = vunpack.c.h.s8.bf16 %v371
    %404 = vmatprep.subr.bf16.mxu0 0
    %405 = vmatpush1.bf16.msra.mxu0 %v65
    %406 = vmatprep.subr.bf16.mxu0 0
    %407 = vmatpush1.bf16.msra.mxu0 %v64
    %408 = vmatprep.subr.bf16.mxu0 0
    %409 = vmatpush1.bf16.msra.mxu0 %v63
    %410 = vmatprep.subr.bf16.mxu0 0
    %411 = vmatpush1.bf16.msra.mxu0 %v62
    %412 = vmatprep.subr.bf16.mxu0 0
    %413 = vmatpush1.bf16.msra.mxu0 %v61
    %414 = vmatprep.subr.bf16.mxu0 0
    %415 = vmatpush1.bf16.msra.mxu0 %v60
    %416 = vmatprep.subr.bf16.mxu0 0
    %417 = vmatpush1.bf16.msra.mxu0 %v59
    %418 = vmatprep.subr.bf16.mxu0 0
    %419 = vmatpush1.bf16.msra.mxu0 %v58
    %420 = vmatprep.subr.bf16.mxu0 0
    %421 = vmatpush2.bf16.msra.mxu0 %v73
    %422 = vmatprep.subr.bf16.mxu0 0
    %423 = vmatpush2.bf16.msra.mxu0 %v72
    %424 = vmatprep.subr.bf16.mxu0 0
    %425 = vmatpush2.bf16.msra.mxu0 %v71
    %426 = vmatprep.subr.bf16.mxu0 0
    %427 = vmatpush2.bf16.msra.mxu0 %v70
    %428 = vmatprep.subr.bf16.mxu0 0
    %429 = vmatpush2.bf16.msra.mxu0 %v69
    %430 = vmatprep.subr.bf16.mxu0 0
    %431 = vmatpush2.bf16.msra.mxu0 %v68
    %432 = vmatprep.subr.bf16.mxu0 0
    %433 = vmatpush2.bf16.msra.mxu0 %v67
    %434 = vmatprep.subr.bf16.mxu0 0
    %435 = vmatpush2.bf16.msra.mxu0 %v66
    %436 = vmatprep.mubr.bf16.mxu0 %v373
    %437 = vmatmul.mubr.bf16.gmra.mxu0 %v372
    %v438 = vpop.f32.mrf.mxu0
    %v439 = vadd.f32 0.0, %v438
    %v440 = vpop.f32.mrf.mxu0
    %v441 = vpop.f32.mrf.mxu0
    %v442 = vadd.f32 0.0, %v441
    %v443 = vpop.f32.mrf.mxu0
    %444 = vmatprep.mubr.bf16.mxu0 %v375
    %445 = vmatmul.mubr.bf16.gmra.mxu0 %v374
    %v446 = vpop.f32.mrf.mxu0
    %v447 = vadd.f32 0.0, %v446
    %v448 = vpop.f32.mrf.mxu0
    %v449 = vpop.f32.mrf.mxu0
    %v450 = vadd.f32 0.0, %v449
    %v451 = vpop.f32.mrf.mxu0
    %452 = vmatprep.mubr.bf16.mxu0 %v377
    %453 = vmatmul.mubr.bf16.gmra.mxu0 %v376
    %v454 = vpop.f32.mrf.mxu0
    %v455 = vadd.f32 0.0, %v454
    %v456 = vpop.f32.mrf.mxu0
    %v457 = vpop.f32.mrf.mxu0
    %v458 = vadd.f32 0.0, %v457
    %v459 = vpop.f32.mrf.mxu0
    %460 = vmatprep.mubr.bf16.mxu0 %v379
    %461 = vmatmul.mubr.bf16.gmra.mxu0 %v378
    %v462 = vpop.f32.mrf.mxu0
    %v463 = vadd.f32 0.0, %v462
    %v464 = vpop.f32.mrf.mxu0
    %v465 = vpop.f32.mrf.mxu0
    %v466 = vadd.f32 0.0, %v465
    %v467 = vpop.f32.mrf.mxu0
    %468 = vmatprep.mubr.bf16.mxu0 %v381
    %469 = vmatmul.mubr.bf16.gmra.mxu0 %v380
    %v470 = vpop.f32.mrf.mxu0
    %v471 = vadd.f32 0.0, %v470
    %v472 = vpop.f32.mrf.mxu0
    %v473 = vpop.f32.mrf.mxu0
    %v474 = vadd.f32 0.0, %v473
    %v475 = vpop.f32.mrf.mxu0
    %476 = vmatprep.mubr.bf16.mxu0 %v383
    %477 = vmatmul.mubr.bf16.gmra.mxu0 %v382
    %v478 = vpop.f32.mrf.mxu0
    %v479 = vadd.f32 0.0, %v478
    %v480 = vpop.f32.mrf.mxu0
    %v481 = vpop.f32.mrf.mxu0
    %v482 = vadd.f32 0.0, %v481
    %v483 = vpop.f32.mrf.mxu0
    %484 = vmatprep.mubr.bf16.mxu0 %v385
    %485 = vmatmul.mubr.bf16.gmra.mxu0 %v384
    %v486 = vpop.f32.mrf.mxu0
    %v487 = vadd.f32 0.0, %v486
    %v488 = vpop.f32.mrf.mxu0
    %v489 = vpop.f32.mrf.mxu0
    %v490 = vadd.f32 0.0, %v489
    %v491 = vpop.f32.mrf.mxu0
    %492 = vmatprep.mubr.bf16.mxu0 %v387
    %493 = vmatmul.mubr.bf16.gmra.mxu0 %v386
    %v494 = vpop.f32.mrf.mxu0
    %v495 = vadd.f32 0.0, %v494
    %v496 = vpop.f32.mrf.mxu0
    %v497 = vpop.f32.mrf.mxu0
    %v498 = vadd.f32 0.0, %v497
    %v499 = vpop.f32.mrf.mxu0
    %500 = vmatprep.mubr.bf16.mxu0 %v389
    %501 = vmatmul.mubr.bf16.gmra.mxu0 %v388
    %v502 = vpop.f32.mrf.mxu0
    %v503 = vadd.f32 0.0, %v502
    %v504 = vpop.f32.mrf.mxu0
    %v505 = vpop.f32.mrf.mxu0
    %v506 = vadd.f32 0.0, %v505
    %v507 = vpop.f32.mrf.mxu0
    %508 = vmatprep.mubr.bf16.mxu0 %v391
    %509 = vmatmul.mubr.bf16.gmra.mxu0 %v390
    %v510 = vpop.f32.mrf.mxu0
    %v511 = vadd.f32 0.0, %v510
    %v512 = vpop.f32.mrf.mxu0
    %v513 = vpop.f32.mrf.mxu0
    %v514 = vadd.f32 0.0, %v513
    %v515 = vpop.f32.mrf.mxu0
    %516 = vmatprep.mubr.bf16.mxu0 %v393
    %517 = vmatmul.mubr.bf16.gmra.mxu0 %v392
    %v518 = vpop.f32.mrf.mxu0
    %v519 = vadd.f32 0.0, %v518
    %v520 = vpop.f32.mrf.mxu0
    %v521 = vpop.f32.mrf.mxu0
    %v522 = vadd.f32 0.0, %v521
    %v523 = vpop.f32.mrf.mxu0
    %524 = vmatprep.mubr.bf16.mxu0 %v395
    %525 = vmatmul.mubr.bf16.gmra.mxu0 %v394
    %v526 = vpop.f32.mrf.mxu0
    %v527 = vadd.f32 0.0, %v526
    %v528 = vpop.f32.mrf.mxu0
    %v529 = vpop.f32.mrf.mxu0
    %v530 = vadd.f32 0.0, %v529
    %v531 = vpop.f32.mrf.mxu0
    %532 = vmatprep.mubr.bf16.mxu0 %v397
    %533 = vmatmul.mubr.bf16.gmra.mxu0 %v396
    %v534 = vpop.f32.mrf.mxu0
    %v535 = vadd.f32 0.0, %v534
    %v536 = vpop.f32.mrf.mxu0
    %v537 = vpop.f32.mrf.mxu0
    %v538 = vadd.f32 0.0, %v537
    %v539 = vpop.f32.mrf.mxu0
    %540 = vmatprep.mubr.bf16.mxu0 %v399
    %541 = vmatmul.mubr.bf16.gmra.mxu0 %v398
    %v542 = vpop.f32.mrf.mxu0
    %v543 = vadd.f32 0.0, %v542
    %v544 = vpop.f32.mrf.mxu0
    %v545 = vpop.f32.mrf.mxu0
    %v546 = vadd.f32 0.0, %v545
    %v547 = vpop.f32.mrf.mxu0
    %548 = vmatprep.mubr.bf16.mxu0 %v401
    %549 = vmatmul.mubr.bf16.gmra.mxu0 %v400
    %v550 = vpop.f32.mrf.mxu0
    %v551 = vadd.f32 0.0, %v550
    %v552 = vpop.f32.mrf.mxu0
    %v553 = vpop.f32.mrf.mxu0
    %v554 = vadd.f32 0.0, %v553
    %v555 = vpop.f32.mrf.mxu0
    %556 = vmatprep.mubr.bf16.mxu0 %v403
    %557 = vmatmul.mubr.bf16.gmra.mxu0 %v402
    %v558 = vpop.f32.mrf.mxu0
    %v559 = vadd.f32 0.0, %v558
    %v560 = vpop.f32.mrf.mxu0
    %v561 = vpop.f32.mrf.mxu0
    %v562 = vadd.f32 0.0, %v561
    %v563 = vpop.f32.mrf.mxu0
    %564 = vdwg.mxu0
    %v565 = vld [vmem:[%s2] sm:$0xff]
    %v566 = vld [vmem:[%s2 + $0x8] sm:$0xff]
    %v567 = vld [vmem:[%s2 + $0x10] sm:$0xff]
    %v568 = vld [vmem:[%s2 + $0x18] sm:$0xff]
    %v569 = vld [vmem:[%s2 + $0x20] sm:$0xff]
    %v570 = vld [vmem:[%s2 + $0x28] sm:$0xff]
    %v571 = vld [vmem:[%s2 + $0x30] sm:$0xff]
    %v572 = vld [vmem:[%s2 + $0x38] sm:$0xff]
    %v573 = vld [vmem:[%s2 + $0x40] sm:$0xff]
    %v574 = vld [vmem:[%s2 + $0x48] sm:$0xff]
    %v575 = vld [vmem:[%s2 + $0x50] sm:$0xff]
    %v576 = vld [vmem:[%s2 + $0x58] sm:$0xff]
    %v577 = vld [vmem:[%s2 + $0x60] sm:$0xff]
    %v578 = vld [vmem:[%s2 + $0x68] sm:$0xff]
    %v579 = vld [vmem:[%s2 + $0x70] sm:$0xff]
    %v580 = vld [vmem:[%s2 + $0x78] sm:$0xff]
    %v581 = vld [vmem:[%s2 + $0x80] sm:$0xff]
    %v582 = vld [vmem:[%s2 + $0x88] sm:$0xff]
    %v583 = vld [vmem:[%s2 + $0x90] sm:$0xff]
    %v584 = vld [vmem:[%s2 + $0x98] sm:$0xff]
    %v585 = vld [vmem:[%s2 + $0xa0] sm:$0xff]
    %v586 = vld [vmem:[%s2 + $0xa8] sm:$0xff]
    %v587 = vld [vmem:[%s2 + $0xb0] sm:$0xff]
    %v588 = vld [vmem:[%s2 + $0xb8] sm:$0xff]
    %v589 = vld [vmem:[%s2 + $0xc0] sm:$0xff]
    %v590 = vld [vmem:[%s2 + $0xc8] sm:$0xff]
    %v591 = vld [vmem:[%s2 + $0xd0] sm:$0xff]
    %v592 = vld [vmem:[%s2 + $0xd8] sm:$0xff]
    %v593 = vld [vmem:[%s2 + $0xe0] sm:$0xff]
    %v594 = vld [vmem:[%s2 + $0xe8] sm:$0xff]
    %v595 = vld [vmem:[%s2 + $0xf0] sm:$0xff]
    %v596 = vld [vmem:[%s2 + $0xf8] sm:$0xff]
    %598 = vset.pattern.permute.xlu0 0
    %599 = vperm.xlu0 %598, %v565
    %v600 = vpop.permute.xlu0 %599
    %603 = vset.pattern.permute.xlu0 0
    %604 = vperm.xlu0 %603, %v566
    %v605 = vpop.permute.xlu0 %604
    %608 = vset.pattern.permute.xlu0 0
    %609 = vperm.xlu0 %608, %v567
    %v610 = vpop.permute.xlu0 %609
    %613 = vset.pattern.permute.xlu0 0
    %614 = vperm.xlu0 %613, %v568
    %v615 = vpop.permute.xlu0 %614
    %618 = vset.pattern.permute.xlu0 0
    %619 = vperm.xlu0 %618, %v569
    %v620 = vpop.permute.xlu0 %619
    %623 = vset.pattern.permute.xlu0 0
    %624 = vperm.xlu0 %623, %v570
    %v625 = vpop.permute.xlu0 %624
    %628 = vset.pattern.permute.xlu0 0
    %629 = vperm.xlu0 %628, %v571
    %v630 = vpop.permute.xlu0 %629
    %633 = vset.pattern.permute.xlu0 0
    %634 = vperm.xlu0 %633, %v572
    %v635 = vpop.permute.xlu0 %634
    %638 = vset.pattern.permute.xlu0 0
    %639 = vperm.xlu0 %638, %v573
    %v640 = vpop.permute.xlu0 %639
    %643 = vset.pattern.permute.xlu0 0
    %644 = vperm.xlu0 %643, %v574
    %v645 = vpop.permute.xlu0 %644
    %648 = vset.pattern.permute.xlu0 0
    %649 = vperm.xlu0 %648, %v575
    %v650 = vpop.permute.xlu0 %649
    %653 = vset.pattern.permute.xlu0 0
    %654 = vperm.xlu0 %653, %v576
    %v655 = vpop.permute.xlu0 %654
    %658 = vset.pattern.permute.xlu0 0
    %659 = vperm.xlu0 %658, %v577
    %v660 = vpop.permute.xlu0 %659
    %663 = vset.pattern.permute.xlu0 0
    %664 = vperm.xlu0 %663, %v578
    %v665 = vpop.permute.xlu0 %664
    %668 = vset.pattern.permute.xlu0 0
    %669 = vperm.xlu0 %668, %v579
    %v670 = vpop.permute.xlu0 %669
    %673 = vset.pattern.permute.xlu0 0
    %674 = vperm.xlu0 %673, %v580
    %v675 = vpop.permute.xlu0 %674
    %678 = vset.pattern.permute.xlu0 0
    %679 = vperm.xlu0 %678, %v581
    %v680 = vpop.permute.xlu0 %679
    %683 = vset.pattern.permute.xlu0 0
    %684 = vperm.xlu0 %683, %v582
    %v685 = vpop.permute.xlu0 %684
    %688 = vset.pattern.permute.xlu0 0
    %689 = vperm.xlu0 %688, %v583
    %v690 = vpop.permute.xlu0 %689
    %693 = vset.pattern.permute.xlu0 0
    %694 = vperm.xlu0 %693, %v584
    %v695 = vpop.permute.xlu0 %694
    %698 = vset.pattern.permute.xlu0 0
    %699 = vperm.xlu0 %698, %v585
    %v700 = vpop.permute.xlu0 %699
    %703 = vset.pattern.permute.xlu0 0
    %704 = vperm.xlu0 %703, %v586
    %v705 = vpop.permute.xlu0 %704
    %708 = vset.pattern.permute.xlu0 0
    %709 = vperm.xlu0 %708, %v587
    %v710 = vpop.permute.xlu0 %709
    %713 = vset.pattern.permute.xlu0 0
    %714 = vperm.xlu0 %713, %v588
    %v715 = vpop.permute.xlu0 %714
    %718 = vset.pattern.permute.xlu0 0
    %719 = vperm.xlu0 %718, %v589
    %v720 = vpop.permute.xlu0 %719
    %723 = vset.pattern.permute.xlu0 0
    %724 = vperm.xlu0 %723, %v590
    %v725 = vpop.permute.xlu0 %724
    %728 = vset.pattern.permute.xlu0 0
    %729 = vperm.xlu0 %728, %v591
    %v730 = vpop.permute.xlu0 %729
    %733 = vset.pattern.permute.xlu0 0
    %734 = vperm.xlu0 %733, %v592
    %v735 = vpop.permute.xlu0 %734
    %738 = vset.pattern.permute.xlu0 0
    %739 = vperm.xlu0 %738, %v593
    %v740 = vpop.permute.xlu0 %739
    %743 = vset.pattern.permute.xlu0 0
    %744 = vperm.xlu0 %743, %v594
    %v745 = vpop.permute.xlu0 %744
    %748 = vset.pattern.permute.xlu0 0
    %749 = vperm.xlu0 %748, %v595
    %v750 = vpop.permute.xlu0 %749
    %753 = vset.pattern.permute.xlu0 0
    %754 = vperm.xlu0 %753, %v596
    %v755 = vpop.permute.xlu0 %754
    %v757 = vmul.f32 %v439, %v600
    %v758 = vmul.f32 %v442, %v605
    %v759 = vmul.f32 %v447, %v610
    %v760 = vmul.f32 %v450, %v615
    %v761 = vmul.f32 %v455, %v620
    %v762 = vmul.f32 %v458, %v625
    %v763 = vmul.f32 %v463, %v630
    %v764 = vmul.f32 %v466, %v635
    %v765 = vmul.f32 %v471, %v640
    %v766 = vmul.f32 %v474, %v645
    %v767 = vmul.f32 %v479, %v650
    %v768 = vmul.f32 %v482, %v655
    %v769 = vmul.f32 %v487, %v660
    %v770 = vmul.f32 %v490, %v665
    %v771 = vmul.f32 %v495, %v670
    %v772 = vmul.f32 %v498, %v675
    %v773 = vmul.f32 %v503, %v680
    %v774 = vmul.f32 %v506, %v685
    %v775 = vmul.f32 %v511, %v690
    %v776 = vmul.f32 %v514, %v695
    %v777 = vmul.f32 %v519, %v700
    %v778 = vmul.f32 %v522, %v705
    %v779 = vmul.f32 %v527, %v710
    %v780 = vmul.f32 %v530, %v715
    %v781 = vmul.f32 %v535, %v720
    %v782 = vmul.f32 %v538, %v725
    %v783 = vmul.f32 %v543, %v730
    %v784 = vmul.f32 %v546, %v735
    %v785 = vmul.f32 %v551, %v740
    %v786 = vmul.f32 %v554, %v745
    %v787 = vmul.f32 %v559, %v750
    %v788 = vmul.f32 %v562, %v755
    %v789 = vpack.c.bf16 %v758, %v757
    %v790 = vpack.c.bf16 %v760, %v759
    %v791 = vpack.c.bf16 %v762, %v761
    %v792 = vpack.c.bf16 %v764, %v763
    %v793 = vpack.c.bf16 %v766, %v765
    %v794 = vpack.c.bf16 %v768, %v767
    %v795 = vpack.c.bf16 %v770, %v769
    %v796 = vpack.c.bf16 %v772, %v771
    %v797 = vpack.c.bf16 %v774, %v773
    %v798 = vpack.c.bf16 %v776, %v775
    %v799 = vpack.c.bf16 %v778, %v777
    %v800 = vpack.c.bf16 %v780, %v779
    %v801 = vpack.c.bf16 %v782, %v781
    %v802 = vpack.c.bf16 %v784, %v783
    %v803 = vpack.c.bf16 %v786, %v785
    %v804 = vpack.c.bf16 %v788, %v787
    %v805 = vld [vmem:[%s3] sm:$0xf]
    %v806 = vld [vmem:[%s3 + $0x4] sm:$0xf]
    %v807 = vld [vmem:[%s3 + $0x8] sm:$0xf]
    %v808 = vld [vmem:[%s3 + $0xc] sm:$0xf]
    %v813 = vunpack.c.l.b16 %v805
    %v814 = vunpack.c.l.b16 %v806
    %v815 = vunpack.c.l.b16 %v807
    %v816 = vunpack.c.l.b16 %v808
    %v817 = vpack.c.b16 %v814, %v813
    %v818 = vpack.c.b16 %v816, %v815
    %v822 = vsel %vm146, %v789, 0
    %v825 = vsel %vm146, %v790, 0
    %v828 = vsel %vm146, %v791, 0
    %v831 = vsel %vm146, %v792, 0
    %v834 = vsel %vm146, %v793, 0
    %v837 = vsel %vm146, %v794, 0
    %v840 = vsel %vm146, %v795, 0
    %v843 = vsel %vm146, %v796, 0
    %v846 = vsel %vm146, %v797, 0
    %v849 = vsel %vm146, %v798, 0
    %v852 = vsel %vm146, %v799, 0
    %v855 = vsel %vm146, %v800, 0
    %v858 = vsel %vm146, %v801, 0
    %v861 = vsel %vm146, %v802, 0
    %v864 = vsel %vm146, %v803, 0
    %v867 = vsel %vm146, %v804, 0
    %869 = vmatprep.subr.bf16.mxu0 0
    %870 = vmatpush1.bf16.msra.mxu0 0
    %871 = vmatprep.subr.bf16.mxu0 0
    %872 = vmatpush1.bf16.msra.mxu0 0
    %873 = vmatprep.subr.bf16.mxu0 0
    %874 = vmatpush1.bf16.msra.mxu0 0
    %875 = vmatprep.subr.bf16.mxu0 0
    %876 = vmatpush1.bf16.msra.mxu0 0
    %877 = vmatprep.subr.bf16.mxu0 0
    %878 = vmatpush1.bf16.msra.mxu0 0
    %879 = vmatprep.subr.bf16.mxu0 0
    %880 = vmatpush1.bf16.msra.mxu0 0
    %881 = vmatprep.subr.bf16.mxu0 0
    %882 = vmatpush1.bf16.msra.mxu0 %v818
    %883 = vmatprep.subr.bf16.mxu0 0
    %884 = vmatpush1.bf16.msra.mxu0 %v817
    %885 = vmatprep.subr.bf16.mxu0 0
    %886 = vmatpush2.bf16.msra.mxu0 0
    %887 = vmatprep.subr.bf16.mxu0 0
    %888 = vmatpush2.bf16.msra.mxu0 0
    %889 = vmatprep.subr.bf16.mxu0 0
    %890 = vmatpush2.bf16.msra.mxu0 0
    %891 = vmatprep.subr.bf16.mxu0 0
    %892 = vmatpush2.bf16.msra.mxu0 0
    %893 = vmatprep.subr.bf16.mxu0 0
    %894 = vmatpush2.bf16.msra.mxu0 0
    %895 = vmatprep.subr.bf16.mxu0 0
    %896 = vmatpush2.bf16.msra.mxu0 0
    %897 = vmatprep.subr.bf16.mxu0 0
    %898 = vmatpush2.bf16.msra.mxu0 0
    %899 = vmatprep.subr.bf16.mxu0 0
    %900 = vmatpush2.bf16.msra.mxu0 0
    %901 = vmatprep.mubr.bf16.mxu0 0
    %902 = vmatmul.mubr.bf16.gmra.mxu0 %v822
    %v903 = vpop.f32.mrf.mxu0
    %v904 = vadd.f32 0.0, %v903
    %v905 = vpop.f32.mrf.mxu0
    %v906 = vpop.f32.mrf.mxu0
    %v907 = vadd.f32 0.0, %v906
    %v908 = vpop.f32.mrf.mxu0
    %909 = vmatprep.mubr.bf16.mxu0 0
    %910 = vmatmul.mubr.bf16.gmra.mxu0 %v825
    %v911 = vpop.f32.mrf.mxu0
    %v912 = vadd.f32 0.0, %v911
    %v913 = vpop.f32.mrf.mxu0
    %v914 = vpop.f32.mrf.mxu0
    %v915 = vadd.f32 0.0, %v914
    %v916 = vpop.f32.mrf.mxu0
    %917 = vmatprep.mubr.bf16.mxu0 0
    %918 = vmatmul.mubr.bf16.gmra.mxu0 %v828
    %v919 = vpop.f32.mrf.mxu0
    %v920 = vadd.f32 0.0, %v919
    %v921 = vpop.f32.mrf.mxu0
    %v922 = vpop.f32.mrf.mxu0
    %v923 = vadd.f32 0.0, %v922
    %v924 = vpop.f32.mrf.mxu0
    %925 = vmatprep.mubr.bf16.mxu0 0
    %926 = vmatmul.mubr.bf16.gmra.mxu0 %v831
    %v927 = vpop.f32.mrf.mxu0
    %v928 = vadd.f32 0.0, %v927
    %v929 = vpop.f32.mrf.mxu0
    %v930 = vpop.f32.mrf.mxu0
    %v931 = vadd.f32 0.0, %v930
    %v932 = vpop.f32.mrf.mxu0
    %933 = vmatprep.mubr.bf16.mxu0 0
    %934 = vmatmul.mubr.bf16.gmra.mxu0 %v834
    %v935 = vpop.f32.mrf.mxu0
    %v936 = vadd.f32 0.0, %v935
    %v937 = vpop.f32.mrf.mxu0
    %v938 = vpop.f32.mrf.mxu0
    %v939 = vadd.f32 0.0, %v938
    %v940 = vpop.f32.mrf.mxu0
    %941 = vmatprep.mubr.bf16.mxu0 0
    %942 = vmatmul.mubr.bf16.gmra.mxu0 %v837
    %v943 = vpop.f32.mrf.mxu0
    %v944 = vadd.f32 0.0, %v943
    %v945 = vpop.f32.mrf.mxu0
    %v946 = vpop.f32.mrf.mxu0
    %v947 = vadd.f32 0.0, %v946
    %v948 = vpop.f32.mrf.mxu0
    %949 = vmatprep.mubr.bf16.mxu0 0
    %950 = vmatmul.mubr.bf16.gmra.mxu0 %v840
    %v951 = vpop.f32.mrf.mxu0
    %v952 = vadd.f32 0.0, %v951
    %v953 = vpop.f32.mrf.mxu0
    %v954 = vpop.f32.mrf.mxu0
    %v955 = vadd.f32 0.0, %v954
    %v956 = vpop.f32.mrf.mxu0
    %957 = vmatprep.mubr.bf16.mxu0 0
    %958 = vmatmul.mubr.bf16.gmra.mxu0 %v843
    %v959 = vpop.f32.mrf.mxu0
    %v960 = vadd.f32 0.0, %v959
    %v961 = vpop.f32.mrf.mxu0
    %v962 = vpop.f32.mrf.mxu0
    %v963 = vadd.f32 0.0, %v962
    %v964 = vpop.f32.mrf.mxu0
    %965 = vmatprep.mubr.bf16.mxu0 0
    %966 = vmatmul.mubr.bf16.gmra.mxu0 %v846
    %v967 = vpop.f32.mrf.mxu0
    %v968 = vadd.f32 0.0, %v967
    %v969 = vpop.f32.mrf.mxu0
    %v970 = vpop.f32.mrf.mxu0
    %v971 = vadd.f32 0.0, %v970
    %v972 = vpop.f32.mrf.mxu0
    %973 = vmatprep.mubr.bf16.mxu0 0
    %974 = vmatmul.mubr.bf16.gmra.mxu0 %v849
    %v975 = vpop.f32.mrf.mxu0
    %v976 = vadd.f32 0.0, %v975
    %v977 = vpop.f32.mrf.mxu0
    %v978 = vpop.f32.mrf.mxu0
    %v979 = vadd.f32 0.0, %v978
    %v980 = vpop.f32.mrf.mxu0
    %981 = vmatprep.mubr.bf16.mxu0 0
    %982 = vmatmul.mubr.bf16.gmra.mxu0 %v852
    %v983 = vpop.f32.mrf.mxu0
    %v984 = vadd.f32 0.0, %v983
    %v985 = vpop.f32.mrf.mxu0
    %v986 = vpop.f32.mrf.mxu0
    %v987 = vadd.f32 0.0, %v986
    %v988 = vpop.f32.mrf.mxu0
    %989 = vmatprep.mubr.bf16.mxu0 0
    %990 = vmatmul.mubr.bf16.gmra.mxu0 %v855
    %v991 = vpop.f32.mrf.mxu0
    %v992 = vadd.f32 0.0, %v991
    %v993 = vpop.f32.mrf.mxu0
    %v994 = vpop.f32.mrf.mxu0
    %v995 = vadd.f32 0.0, %v994
    %v996 = vpop.f32.mrf.mxu0
    %997 = vmatprep.mubr.bf16.mxu0 0
    %998 = vmatmul.mubr.bf16.gmra.mxu0 %v858
    %v999 = vpop.f32.mrf.mxu0
    %v1000 = vadd.f32 0.0, %v999
    %v1001 = vpop.f32.mrf.mxu0
    %v1002 = vpop.f32.mrf.mxu0
    %v1003 = vadd.f32 0.0, %v1002
    %v1004 = vpop.f32.mrf.mxu0
    %1005 = vmatprep.mubr.bf16.mxu0 0
    %1006 = vmatmul.mubr.bf16.gmra.mxu0 %v861
    %v1007 = vpop.f32.mrf.mxu0
    %v1008 = vadd.f32 0.0, %v1007
    %v1009 = vpop.f32.mrf.mxu0
    %v1010 = vpop.f32.mrf.mxu0
    %v1011 = vadd.f32 0.0, %v1010
    %v1012 = vpop.f32.mrf.mxu0
    %1013 = vmatprep.mubr.bf16.mxu0 0
    %1014 = vmatmul.mubr.bf16.gmra.mxu0 %v864
    %v1015 = vpop.f32.mrf.mxu0
    %v1016 = vadd.f32 0.0, %v1015
    %v1017 = vpop.f32.mrf.mxu0
    %v1018 = vpop.f32.mrf.mxu0
    %v1019 = vadd.f32 0.0, %v1018
    %v1020 = vpop.f32.mrf.mxu0
    %1021 = vmatprep.mubr.bf16.mxu0 0
    %1022 = vmatmul.mubr.bf16.gmra.mxu0 %v867
    %v1023 = vpop.f32.mrf.mxu0
    %v1024 = vadd.f32 0.0, %v1023
    %v1025 = vpop.f32.mrf.mxu0
    %v1026 = vpop.f32.mrf.mxu0
    %v1027 = vadd.f32 0.0, %v1026
    %v1028 = vpop.f32.mrf.mxu0
    %1029 = vdwg.mxu0
    %v1030 = vadd.f32 %v230, %v904
    %v1031 = vadd.f32 %v233, %v907
    %v1032 = vadd.f32 %v238, %v912
    %v1033 = vadd.f32 %v241, %v915
    %v1034 = vadd.f32 %v246, %v920
    %v1035 = vadd.f32 %v249, %v923
    %v1036 = vadd.f32 %v254, %v928
    %v1037 = vadd.f32 %v257, %v931
    %v1038 = vadd.f32 %v262, %v936
    %v1039 = vadd.f32 %v265, %v939
    %v1040 = vadd.f32 %v270, %v944
    %v1041 = vadd.f32 %v273, %v947
    %v1042 = vadd.f32 %v278, %v952
    %v1043 = vadd.f32 %v281, %v955
    %v1044 = vadd.f32 %v286, %v960
    %v1045 = vadd.f32 %v289, %v963
    %v1046 = vadd.f32 %v294, %v968
    %v1047 = vadd.f32 %v297, %v971
    %v1048 = vadd.f32 %v302, %v976
    %v1049 = vadd.f32 %v305, %v979
    %v1050 = vadd.f32 %v310, %v984
    %v1051 = vadd.f32 %v313, %v987
    %v1052 = vadd.f32 %v318, %v992
    %v1053 = vadd.f32 %v321, %v995
    %v1054 = vadd.f32 %v326, %v1000
    %v1055 = vadd.f32 %v329, %v1003
    %v1056 = vadd.f32 %v334, %v1008
    %v1057 = vadd.f32 %v337, %v1011
    %v1058 = vadd.f32 %v342, %v1016
    %v1059 = vadd.f32 %v345, %v1019
    %v1060 = vadd.f32 %v350, %v1024
    %v1061 = vadd.f32 %v353, %v1027
    %s1062 = scalar_lea.vmem %s1, 128
    %v1063 = vld [vmem:[%s1062] sm:$0xff]
    %v1064 = vld [vmem:[%s1062 + $0x8] sm:$0xff]
    %v1065 = vld [vmem:[%s1062 + $0x10] sm:$0xff]
    %v1066 = vld [vmem:[%s1062 + $0x18] sm:$0xff]
    %v1067 = vld [vmem:[%s1062 + $0x20] sm:$0xff]
    %v1068 = vld [vmem:[%s1062 + $0x28] sm:$0xff]
    %v1069 = vld [vmem:[%s1062 + $0x30] sm:$0xff]
    %v1070 = vld [vmem:[%s1062 + $0x38] sm:$0xff]
    %v1071 = vld [vmem:[%s1062 + $0x40] sm:$0xff]
    %v1072 = vld [vmem:[%s1062 + $0x48] sm:$0xff]
    %v1073 = vld [vmem:[%s1062 + $0x50] sm:$0xff]
    %v1074 = vld [vmem:[%s1062 + $0x58] sm:$0xff]
    %v1075 = vld [vmem:[%s1062 + $0x60] sm:$0xff]
    %v1076 = vld [vmem:[%s1062 + $0x68] sm:$0xff]
    %v1077 = vld [vmem:[%s1062 + $0x70] sm:$0xff]
    %v1078 = vld [vmem:[%s1062 + $0x78] sm:$0xff]
    %v1079 = vunpack.c.l.s8.bf16 %v1063
    %v1080 = vunpack.c.l.s8.bf16 %v1064
    %v1081 = vunpack.c.h.s8.bf16 %v1063
    %v1082 = vunpack.c.h.s8.bf16 %v1064
    %v1083 = vunpack.c.l.s8.bf16 %v1065
    %v1084 = vunpack.c.l.s8.bf16 %v1066
    %v1085 = vunpack.c.h.s8.bf16 %v1065
    %v1086 = vunpack.c.h.s8.bf16 %v1066
    %v1087 = vunpack.c.l.s8.bf16 %v1067
    %v1088 = vunpack.c.l.s8.bf16 %v1068
    %v1089 = vunpack.c.h.s8.bf16 %v1067
    %v1090 = vunpack.c.h.s8.bf16 %v1068
    %v1091 = vunpack.c.l.s8.bf16 %v1069
    %v1092 = vunpack.c.l.s8.bf16 %v1070
    %v1093 = vunpack.c.h.s8.bf16 %v1069
    %v1094 = vunpack.c.h.s8.bf16 %v1070
    %v1095 = vunpack.c.l.s8.bf16 %v1071
    %v1096 = vunpack.c.l.s8.bf16 %v1072
    %v1097 = vunpack.c.h.s8.bf16 %v1071
    %v1098 = vunpack.c.h.s8.bf16 %v1072
    %v1099 = vunpack.c.l.s8.bf16 %v1073
    %v1100 = vunpack.c.l.s8.bf16 %v1074
    %v1101 = vunpack.c.h.s8.bf16 %v1073
    %v1102 = vunpack.c.h.s8.bf16 %v1074
    %v1103 = vunpack.c.l.s8.bf16 %v1075
    %v1104 = vunpack.c.l.s8.bf16 %v1076
    %v1105 = vunpack.c.h.s8.bf16 %v1075
    %v1106 = vunpack.c.h.s8.bf16 %v1076
    %v1107 = vunpack.c.l.s8.bf16 %v1077
    %v1108 = vunpack.c.l.s8.bf16 %v1078
    %v1109 = vunpack.c.h.s8.bf16 %v1077
    %v1110 = vunpack.c.h.s8.bf16 %v1078
    %1111 = vmatprep.subr.bf16.mxu0 0
    %1112 = vmatpush1.bf16.msra.mxu0 %v65
    %1113 = vmatprep.subr.bf16.mxu0 0
    %1114 = vmatpush1.bf16.msra.mxu0 %v64
    %1115 = vmatprep.subr.bf16.mxu0 0
    %1116 = vmatpush1.bf16.msra.mxu0 %v63
    %1117 = vmatprep.subr.bf16.mxu0 0
    %1118 = vmatpush1.bf16.msra.mxu0 %v62
    %1119 = vmatprep.subr.bf16.mxu0 0
    %1120 = vmatpush1.bf16.msra.mxu0 %v61
    %1121 = vmatprep.subr.bf16.mxu0 0
    %1122 = vmatpush1.bf16.msra.mxu0 %v60
    %1123 = vmatprep.subr.bf16.mxu0 0
    %1124 = vmatpush1.bf16.msra.mxu0 %v59
    %1125 = vmatprep.subr.bf16.mxu0 0
    %1126 = vmatpush1.bf16.msra.mxu0 %v58
    %1127 = vmatprep.subr.bf16.mxu0 0
    %1128 = vmatpush2.bf16.msra.mxu0 %v73
    %1129 = vmatprep.subr.bf16.mxu0 0
    %1130 = vmatpush2.bf16.msra.mxu0 %v72
    %1131 = vmatprep.subr.bf16.mxu0 0
    %1132 = vmatpush2.bf16.msra.mxu0 %v71
    %1133 = vmatprep.subr.bf16.mxu0 0
    %1134 = vmatpush2.bf16.msra.mxu0 %v70
    %1135 = vmatprep.subr.bf16.mxu0 0
    %1136 = vmatpush2.bf16.msra.mxu0 %v69
    %1137 = vmatprep.subr.bf16.mxu0 0
    %1138 = vmatpush2.bf16.msra.mxu0 %v68
    %1139 = vmatprep.subr.bf16.mxu0 0
    %1140 = vmatpush2.bf16.msra.mxu0 %v67
    %1141 = vmatprep.subr.bf16.mxu0 0
    %1142 = vmatpush2.bf16.msra.mxu0 %v66
    %1143 = vmatprep.mubr.bf16.mxu0 %v1080
    %1144 = vmatmul.mubr.bf16.gmra.mxu0 %v1079
    %v1145 = vpop.f32.mrf.mxu0
    %v1146 = vadd.f32 0.0, %v1145
    %v1147 = vpop.f32.mrf.mxu0
    %v1148 = vpop.f32.mrf.mxu0
    %v1149 = vadd.f32 0.0, %v1148
    %v1150 = vpop.f32.mrf.mxu0
    %1151 = vmatprep.mubr.bf16.mxu0 %v1082
    %1152 = vmatmul.mubr.bf16.gmra.mxu0 %v1081
    %v1153 = vpop.f32.mrf.mxu0
    %v1154 = vadd.f32 0.0, %v1153
    %v1155 = vpop.f32.mrf.mxu0
    %v1156 = vpop.f32.mrf.mxu0
    %v1157 = vadd.f32 0.0, %v1156
    %v1158 = vpop.f32.mrf.mxu0
    %1159 = vmatprep.mubr.bf16.mxu0 %v1084
    %1160 = vmatmul.mubr.bf16.gmra.mxu0 %v1083
    %v1161 = vpop.f32.mrf.mxu0
    %v1162 = vadd.f32 0.0, %v1161
    %v1163 = vpop.f32.mrf.mxu0
    %v1164 = vpop.f32.mrf.mxu0
    %v1165 = vadd.f32 0.0, %v1164
    %v1166 = vpop.f32.mrf.mxu0
    %1167 = vmatprep.mubr.bf16.mxu0 %v1086
    %1168 = vmatmul.mubr.bf16.gmra.mxu0 %v1085
    %v1169 = vpop.f32.mrf.mxu0
    %v1170 = vadd.f32 0.0, %v1169
    %v1171 = vpop.f32.mrf.mxu0
    %v1172 = vpop.f32.mrf.mxu0
    %v1173 = vadd.f32 0.0, %v1172
    %v1174 = vpop.f32.mrf.mxu0
    %1175 = vmatprep.mubr.bf16.mxu0 %v1088
    %1176 = vmatmul.mubr.bf16.gmra.mxu0 %v1087
    %v1177 = vpop.f32.mrf.mxu0
    %v1178 = vadd.f32 0.0, %v1177
    %v1179 = vpop.f32.mrf.mxu0
    %v1180 = vpop.f32.mrf.mxu0
    %v1181 = vadd.f32 0.0, %v1180
    %v1182 = vpop.f32.mrf.mxu0
    %1183 = vmatprep.mubr.bf16.mxu0 %v1090
    %1184 = vmatmul.mubr.bf16.gmra.mxu0 %v1089
    %v1185 = vpop.f32.mrf.mxu0
    %v1186 = vadd.f32 0.0, %v1185
    %v1187 = vpop.f32.mrf.mxu0
    %v1188 = vpop.f32.mrf.mxu0
    %v1189 = vadd.f32 0.0, %v1188
    %v1190 = vpop.f32.mrf.mxu0
    %1191 = vmatprep.mubr.bf16.mxu0 %v1092
    %1192 = vmatmul.mubr.bf16.gmra.mxu0 %v1091
    %v1193 = vpop.f32.mrf.mxu0
    %v1194 = vadd.f32 0.0, %v1193
    %v1195 = vpop.f32.mrf.mxu0
    %v1196 = vpop.f32.mrf.mxu0
    %v1197 = vadd.f32 0.0, %v1196
    %v1198 = vpop.f32.mrf.mxu0
    %1199 = vmatprep.mubr.bf16.mxu0 %v1094
    %1200 = vmatmul.mubr.bf16.gmra.mxu0 %v1093
    %v1201 = vpop.f32.mrf.mxu0
    %v1202 = vadd.f32 0.0, %v1201
    %v1203 = vpop.f32.mrf.mxu0
    %v1204 = vpop.f32.mrf.mxu0
    %v1205 = vadd.f32 0.0, %v1204
    %v1206 = vpop.f32.mrf.mxu0
    %1207 = vmatprep.mubr.bf16.mxu0 %v1096
    %1208 = vmatmul.mubr.bf16.gmra.mxu0 %v1095
    %v1209 = vpop.f32.mrf.mxu0
    %v1210 = vadd.f32 0.0, %v1209
    %v1211 = vpop.f32.mrf.mxu0
    %v1212 = vpop.f32.mrf.mxu0
    %v1213 = vadd.f32 0.0, %v1212
    %v1214 = vpop.f32.mrf.mxu0
    %1215 = vmatprep.mubr.bf16.mxu0 %v1098
    %1216 = vmatmul.mubr.bf16.gmra.mxu0 %v1097
    %v1217 = vpop.f32.mrf.mxu0
    %v1218 = vadd.f32 0.0, %v1217
    %v1219 = vpop.f32.mrf.mxu0
    %v1220 = vpop.f32.mrf.mxu0
    %v1221 = vadd.f32 0.0, %v1220
    %v1222 = vpop.f32.mrf.mxu0
    %1223 = vmatprep.mubr.bf16.mxu0 %v1100
    %1224 = vmatmul.mubr.bf16.gmra.mxu0 %v1099
    %v1225 = vpop.f32.mrf.mxu0
    %v1226 = vadd.f32 0.0, %v1225
    %v1227 = vpop.f32.mrf.mxu0
    %v1228 = vpop.f32.mrf.mxu0
    %v1229 = vadd.f32 0.0, %v1228
    %v1230 = vpop.f32.mrf.mxu0
    %1231 = vmatprep.mubr.bf16.mxu0 %v1102
    %1232 = vmatmul.mubr.bf16.gmra.mxu0 %v1101
    %v1233 = vpop.f32.mrf.mxu0
    %v1234 = vadd.f32 0.0, %v1233
    %v1235 = vpop.f32.mrf.mxu0
    %v1236 = vpop.f32.mrf.mxu0
    %v1237 = vadd.f32 0.0, %v1236
    %v1238 = vpop.f32.mrf.mxu0
    %1239 = vmatprep.mubr.bf16.mxu0 %v1104
    %1240 = vmatmul.mubr.bf16.gmra.mxu0 %v1103
    %v1241 = vpop.f32.mrf.mxu0
    %v1242 = vadd.f32 0.0, %v1241
    %v1243 = vpop.f32.mrf.mxu0
    %v1244 = vpop.f32.mrf.mxu0
    %v1245 = vadd.f32 0.0, %v1244
    %v1246 = vpop.f32.mrf.mxu0
    %1247 = vmatprep.mubr.bf16.mxu0 %v1106
    %1248 = vmatmul.mubr.bf16.gmra.mxu0 %v1105
    %v1249 = vpop.f32.mrf.mxu0
    %v1250 = vadd.f32 0.0, %v1249
    %v1251 = vpop.f32.mrf.mxu0
    %v1252 = vpop.f32.mrf.mxu0
    %v1253 = vadd.f32 0.0, %v1252
    %v1254 = vpop.f32.mrf.mxu0
    %1255 = vmatprep.mubr.bf16.mxu0 %v1108
    %1256 = vmatmul.mubr.bf16.gmra.mxu0 %v1107
    %v1257 = vpop.f32.mrf.mxu0
    %v1258 = vadd.f32 0.0, %v1257
    %v1259 = vpop.f32.mrf.mxu0
    %v1260 = vpop.f32.mrf.mxu0
    %v1261 = vadd.f32 0.0, %v1260
    %v1262 = vpop.f32.mrf.mxu0
    %1263 = vmatprep.mubr.bf16.mxu0 %v1110
    %1264 = vmatmul.mubr.bf16.gmra.mxu0 %v1109
    %v1265 = vpop.f32.mrf.mxu0
    %v1266 = vadd.f32 0.0, %v1265
    %v1267 = vpop.f32.mrf.mxu0
    %v1268 = vpop.f32.mrf.mxu0
    %v1269 = vadd.f32 0.0, %v1268
    %v1270 = vpop.f32.mrf.mxu0
    %1271 = vdwg.mxu0
    %s1272 = scalar_lea.vmem %s2, 256
    %v1273 = vld [vmem:[%s1272] sm:$0xff]
    %v1274 = vld [vmem:[%s1272 + $0x8] sm:$0xff]
    %v1275 = vld [vmem:[%s1272 + $0x10] sm:$0xff]
    %v1276 = vld [vmem:[%s1272 + $0x18] sm:$0xff]
    %v1277 = vld [vmem:[%s1272 + $0x20] sm:$0xff]
    %v1278 = vld [vmem:[%s1272 + $0x28] sm:$0xff]
    %v1279 = vld [vmem:[%s1272 + $0x30] sm:$0xff]
    %v1280 = vld [vmem:[%s1272 + $0x38] sm:$0xff]
    %v1281 = vld [vmem:[%s1272 + $0x40] sm:$0xff]
    %v1282 = vld [vmem:[%s1272 + $0x48] sm:$0xff]
    %v1283 = vld [vmem:[%s1272 + $0x50] sm:$0xff]
    %v1284 = vld [vmem:[%s1272 + $0x58] sm:$0xff]
    %v1285 = vld [vmem:[%s1272 + $0x60] sm:$0xff]
    %v1286 = vld [vmem:[%s1272 + $0x68] sm:$0xff]
    %v1287 = vld [vmem:[%s1272 + $0x70] sm:$0xff]
    %v1288 = vld [vmem:[%s1272 + $0x78] sm:$0xff]
    %v1289 = vld [vmem:[%s1272 + $0x80] sm:$0xff]
    %v1290 = vld [vmem:[%s1272 + $0x88] sm:$0xff]
    %v1291 = vld [vmem:[%s1272 + $0x90] sm:$0xff]
    %v1292 = vld [vmem:[%s1272 + $0x98] sm:$0xff]
    %v1293 = vld [vmem:[%s1272 + $0xa0] sm:$0xff]
    %v1294 = vld [vmem:[%s1272 + $0xa8] sm:$0xff]
    %v1295 = vld [vmem:[%s1272 + $0xb0] sm:$0xff]
    %v1296 = vld [vmem:[%s1272 + $0xb8] sm:$0xff]
    %v1297 = vld [vmem:[%s1272 + $0xc0] sm:$0xff]
    %v1298 = vld [vmem:[%s1272 + $0xc8] sm:$0xff]
    %v1299 = vld [vmem:[%s1272 + $0xd0] sm:$0xff]
    %v1300 = vld [vmem:[%s1272 + $0xd8] sm:$0xff]
    %v1301 = vld [vmem:[%s1272 + $0xe0] sm:$0xff]
    %v1302 = vld [vmem:[%s1272 + $0xe8] sm:$0xff]
    %v1303 = vld [vmem:[%s1272 + $0xf0] sm:$0xff]
    %v1304 = vld [vmem:[%s1272 + $0xf8] sm:$0xff]
    %1306 = vset.pattern.permute.xlu0 0
    %1307 = vperm.xlu0 %1306, %v1273
    %v1308 = vpop.permute.xlu0 %1307
    %1311 = vset.pattern.permute.xlu0 0
    %1312 = vperm.xlu0 %1311, %v1274
    %v1313 = vpop.permute.xlu0 %1312
    %1316 = vset.pattern.permute.xlu0 0
    %1317 = vperm.xlu0 %1316, %v1275
    %v1318 = vpop.permute.xlu0 %1317
    %1321 = vset.pattern.permute.xlu0 0
    %1322 = vperm.xlu0 %1321, %v1276
    %v1323 = vpop.permute.xlu0 %1322
    %1326 = vset.pattern.permute.xlu0 0
    %1327 = vperm.xlu0 %1326, %v1277
    %v1328 = vpop.permute.xlu0 %1327
    %1331 = vset.pattern.permute.xlu0 0
    %1332 = vperm.xlu0 %1331, %v1278
    %v1333 = vpop.permute.xlu0 %1332
    %1336 = vset.pattern.permute.xlu0 0
    %1337 = vperm.xlu0 %1336, %v1279
    %v1338 = vpop.permute.xlu0 %1337
    %1341 = vset.pattern.permute.xlu0 0
    %1342 = vperm.xlu0 %1341, %v1280
    %v1343 = vpop.permute.xlu0 %1342
    %1346 = vset.pattern.permute.xlu0 0
    %1347 = vperm.xlu0 %1346, %v1281
    %v1348 = vpop.permute.xlu0 %1347
    %1351 = vset.pattern.permute.xlu0 0
    %1352 = vperm.xlu0 %1351, %v1282
    %v1353 = vpop.permute.xlu0 %1352
    %1356 = vset.pattern.permute.xlu0 0
    %1357 = vperm.xlu0 %1356, %v1283
    %v1358 = vpop.permute.xlu0 %1357
    %1361 = vset.pattern.permute.xlu0 0
    %1362 = vperm.xlu0 %1361, %v1284
    %v1363 = vpop.permute.xlu0 %1362
    %1366 = vset.pattern.permute.xlu0 0
    %1367 = vperm.xlu0 %1366, %v1285
    %v1368 = vpop.permute.xlu0 %1367
    %1371 = vset.pattern.permute.xlu0 0
    %1372 = vperm.xlu0 %1371, %v1286
    %v1373 = vpop.permute.xlu0 %1372
    %1376 = vset.pattern.permute.xlu0 0
    %1377 = vperm.xlu0 %1376, %v1287
    %v1378 = vpop.permute.xlu0 %1377
    %1381 = vset.pattern.permute.xlu0 0
    %1382 = vperm.xlu0 %1381, %v1288
    %v1383 = vpop.permute.xlu0 %1382
    %1386 = vset.pattern.permute.xlu0 0
    %1387 = vperm.xlu0 %1386, %v1289
    %v1388 = vpop.permute.xlu0 %1387
    %1391 = vset.pattern.permute.xlu0 0
    %1392 = vperm.xlu0 %1391, %v1290
    %v1393 = vpop.permute.xlu0 %1392
    %1396 = vset.pattern.permute.xlu0 0
    %1397 = vperm.xlu0 %1396, %v1291
    %v1398 = vpop.permute.xlu0 %1397
    %1401 = vset.pattern.permute.xlu0 0
    %1402 = vperm.xlu0 %1401, %v1292
    %v1403 = vpop.permute.xlu0 %1402
    %1406 = vset.pattern.permute.xlu0 0
    %1407 = vperm.xlu0 %1406, %v1293
    %v1408 = vpop.permute.xlu0 %1407
    %1411 = vset.pattern.permute.xlu0 0
    %1412 = vperm.xlu0 %1411, %v1294
    %v1413 = vpop.permute.xlu0 %1412
    %1416 = vset.pattern.permute.xlu0 0
    %1417 = vperm.xlu0 %1416, %v1295
    %v1418 = vpop.permute.xlu0 %1417
    %1421 = vset.pattern.permute.xlu0 0
    %1422 = vperm.xlu0 %1421, %v1296
    %v1423 = vpop.permute.xlu0 %1422
    %1426 = vset.pattern.permute.xlu0 0
    %1427 = vperm.xlu0 %1426, %v1297
    %v1428 = vpop.permute.xlu0 %1427
    %1431 = vset.pattern.permute.xlu0 0
    %1432 = vperm.xlu0 %1431, %v1298
    %v1433 = vpop.permute.xlu0 %1432
    %1436 = vset.pattern.permute.xlu0 0
    %1437 = vperm.xlu0 %1436, %v1299
    %v1438 = vpop.permute.xlu0 %1437
    %1441 = vset.pattern.permute.xlu0 0
    %1442 = vperm.xlu0 %1441, %v1300
    %v1443 = vpop.permute.xlu0 %1442
    %1446 = vset.pattern.permute.xlu0 0
    %1447 = vperm.xlu0 %1446, %v1301
    %v1448 = vpop.permute.xlu0 %1447
    %1451 = vset.pattern.permute.xlu0 0
    %1452 = vperm.xlu0 %1451, %v1302
    %v1453 = vpop.permute.xlu0 %1452
    %1456 = vset.pattern.permute.xlu0 0
    %1457 = vperm.xlu0 %1456, %v1303
    %v1458 = vpop.permute.xlu0 %1457
    %1461 = vset.pattern.permute.xlu0 0
    %1462 = vperm.xlu0 %1461, %v1304
    %v1463 = vpop.permute.xlu0 %1462
    %v1465 = vmul.f32 %v1146, %v1308
    %v1466 = vmul.f32 %v1149, %v1313
    %v1467 = vmul.f32 %v1154, %v1318
    %v1468 = vmul.f32 %v1157, %v1323
    %v1469 = vmul.f32 %v1162, %v1328
    %v1470 = vmul.f32 %v1165, %v1333
    %v1471 = vmul.f32 %v1170, %v1338
    %v1472 = vmul.f32 %v1173, %v1343
    %v1473 = vmul.f32 %v1178, %v1348
    %v1474 = vmul.f32 %v1181, %v1353
    %v1475 = vmul.f32 %v1186, %v1358
    %v1476 = vmul.f32 %v1189, %v1363
    %v1477 = vmul.f32 %v1194, %v1368
    %v1478 = vmul.f32 %v1197, %v1373
    %v1479 = vmul.f32 %v1202, %v1378
    %v1480 = vmul.f32 %v1205, %v1383
    %v1481 = vmul.f32 %v1210, %v1388
    %v1482 = vmul.f32 %v1213, %v1393
    %v1483 = vmul.f32 %v1218, %v1398
    %v1484 = vmul.f32 %v1221, %v1403
    %v1485 = vmul.f32 %v1226, %v1408
    %v1486 = vmul.f32 %v1229, %v1413
    %v1487 = vmul.f32 %v1234, %v1418
    %v1488 = vmul.f32 %v1237, %v1423
    %v1489 = vmul.f32 %v1242, %v1428
    %v1490 = vmul.f32 %v1245, %v1433
    %v1491 = vmul.f32 %v1250, %v1438
    %v1492 = vmul.f32 %v1253, %v1443
    %v1493 = vmul.f32 %v1258, %v1448
    %v1494 = vmul.f32 %v1261, %v1453
    %v1495 = vmul.f32 %v1266, %v1458
    %v1496 = vmul.f32 %v1269, %v1463
    %v1497 = vpack.c.bf16 %v1466, %v1465
    %v1498 = vpack.c.bf16 %v1468, %v1467
    %v1499 = vpack.c.bf16 %v1470, %v1469
    %v1500 = vpack.c.bf16 %v1472, %v1471
    %v1501 = vpack.c.bf16 %v1474, %v1473
    %v1502 = vpack.c.bf16 %v1476, %v1475
    %v1503 = vpack.c.bf16 %v1478, %v1477
    %v1504 = vpack.c.bf16 %v1480, %v1479
    %v1505 = vpack.c.bf16 %v1482, %v1481
    %v1506 = vpack.c.bf16 %v1484, %v1483
    %v1507 = vpack.c.bf16 %v1486, %v1485
    %v1508 = vpack.c.bf16 %v1488, %v1487
    %v1509 = vpack.c.bf16 %v1490, %v1489
    %v1510 = vpack.c.bf16 %v1492, %v1491
    %v1511 = vpack.c.bf16 %v1494, %v1493
    %v1512 = vpack.c.bf16 %v1496, %v1495
    %s1513 = scalar_lea.vmem %s3, 16
    %v1514 = vld [vmem:[%s1513] sm:$0xf]
    %v1515 = vld [vmem:[%s1513 + $0x4] sm:$0xf]
    %v1516 = vld [vmem:[%s1513 + $0x8] sm:$0xf]
    %v1517 = vld [vmem:[%s1513 + $0xc] sm:$0xf]
    %v1522 = vunpack.c.l.b16 %v1514
    %v1523 = vunpack.c.l.b16 %v1515
    %v1524 = vunpack.c.l.b16 %v1516
    %v1525 = vunpack.c.l.b16 %v1517
    %v1526 = vpack.c.b16 %v1523, %v1522
    %v1527 = vpack.c.b16 %v1525, %v1524
    %v1531 = vsel %vm146, %v1497, 0
    %v1534 = vsel %vm146, %v1498, 0
    %v1537 = vsel %vm146, %v1499, 0
    %v1540 = vsel %vm146, %v1500, 0
    %v1543 = vsel %vm146, %v1501, 0
    %v1546 = vsel %vm146, %v1502, 0
    %v1549 = vsel %vm146, %v1503, 0
    %v1552 = vsel %vm146, %v1504, 0
    %v1555 = vsel %vm146, %v1505, 0
    %v1558 = vsel %vm146, %v1506, 0
    %v1561 = vsel %vm146, %v1507, 0
    %v1564 = vsel %vm146, %v1508, 0
    %v1567 = vsel %vm146, %v1509, 0
    %v1570 = vsel %vm146, %v1510, 0
    %v1573 = vsel %vm146, %v1511, 0
    %v1576 = vsel %vm146, %v1512, 0
    %1578 = vmatprep.subr.bf16.mxu0 0
    %1579 = vmatpush1.bf16.msra.mxu0 0
    %1580 = vmatprep.subr.bf16.mxu0 0
    %1581 = vmatpush1.bf16.msra.mxu0 0
    %1582 = vmatprep.subr.bf16.mxu0 0
    %1583 = vmatpush1.bf16.msra.mxu0 0
    %1584 = vmatprep.subr.bf16.mxu0 0
    %1585 = vmatpush1.bf16.msra.mxu0 0
    %1586 = vmatprep.subr.bf16.mxu0 0
    %1587 = vmatpush1.bf16.msra.mxu0 0
    %1588 = vmatprep.subr.bf16.mxu0 0
    %1589 = vmatpush1.bf16.msra.mxu0 0
    %1590 = vmatprep.subr.bf16.mxu0 0
    %1591 = vmatpush1.bf16.msra.mxu0 %v1527
    %1592 = vmatprep.subr.bf16.mxu0 0
    %1593 = vmatpush1.bf16.msra.mxu0 %v1526
    %1594 = vmatprep.subr.bf16.mxu0 0
    %1595 = vmatpush2.bf16.msra.mxu0 0
    %1596 = vmatprep.subr.bf16.mxu0 0
    %1597 = vmatpush2.bf16.msra.mxu0 0
    %1598 = vmatprep.subr.bf16.mxu0 0
    %1599 = vmatpush2.bf16.msra.mxu0 0
    %1600 = vmatprep.subr.bf16.mxu0 0
    %1601 = vmatpush2.bf16.msra.mxu0 0
    %1602 = vmatprep.subr.bf16.mxu0 0
    %1603 = vmatpush2.bf16.msra.mxu0 0
    %1604 = vmatprep.subr.bf16.mxu0 0
    %1605 = vmatpush2.bf16.msra.mxu0 0
    %1606 = vmatprep.subr.bf16.mxu0 0
    %1607 = vmatpush2.bf16.msra.mxu0 0
    %1608 = vmatprep.subr.bf16.mxu0 0
    %1609 = vmatpush2.bf16.msra.mxu0 0
    %1610 = vmatprep.mubr.bf16.mxu0 0
    %1611 = vmatmul.mubr.bf16.gmra.mxu0 %v1531
    %v1612 = vpop.f32.mrf.mxu0
    %v1613 = vadd.f32 0.0, %v1612
    %v1614 = vpop.f32.mrf.mxu0
    %v1615 = vpop.f32.mrf.mxu0
    %v1616 = vadd.f32 0.0, %v1615
    %v1617 = vpop.f32.mrf.mxu0
    %1618 = vmatprep.mubr.bf16.mxu0 0
    %1619 = vmatmul.mubr.bf16.gmra.mxu0 %v1534
    %v1620 = vpop.f32.mrf.mxu0
    %v1621 = vadd.f32 0.0, %v1620
    %v1622 = vpop.f32.mrf.mxu0
    %v1623 = vpop.f32.mrf.mxu0
    %v1624 = vadd.f32 0.0, %v1623
    %v1625 = vpop.f32.mrf.mxu0
    %1626 = vmatprep.mubr.bf16.mxu0 0
    %1627 = vmatmul.mubr.bf16.gmra.mxu0 %v1537
    %v1628 = vpop.f32.mrf.mxu0
    %v1629 = vadd.f32 0.0, %v1628
    %v1630 = vpop.f32.mrf.mxu0
    %v1631 = vpop.f32.mrf.mxu0
    %v1632 = vadd.f32 0.0, %v1631
    %v1633 = vpop.f32.mrf.mxu0
    %1634 = vmatprep.mubr.bf16.mxu0 0
    %1635 = vmatmul.mubr.bf16.gmra.mxu0 %v1540
    %v1636 = vpop.f32.mrf.mxu0
    %v1637 = vadd.f32 0.0, %v1636
    %v1638 = vpop.f32.mrf.mxu0
    %v1639 = vpop.f32.mrf.mxu0
    %v1640 = vadd.f32 0.0, %v1639
    %v1641 = vpop.f32.mrf.mxu0
    %1642 = vmatprep.mubr.bf16.mxu0 0
    %1643 = vmatmul.mubr.bf16.gmra.mxu0 %v1543
    %v1644 = vpop.f32.mrf.mxu0
    %v1645 = vadd.f32 0.0, %v1644
    %v1646 = vpop.f32.mrf.mxu0
    %v1647 = vpop.f32.mrf.mxu0
    %v1648 = vadd.f32 0.0, %v1647
    %v1649 = vpop.f32.mrf.mxu0
    %1650 = vmatprep.mubr.bf16.mxu0 0
    %1651 = vmatmul.mubr.bf16.gmra.mxu0 %v1546
    %v1652 = vpop.f32.mrf.mxu0
    %v1653 = vadd.f32 0.0, %v1652
    %v1654 = vpop.f32.mrf.mxu0
    %v1655 = vpop.f32.mrf.mxu0
    %v1656 = vadd.f32 0.0, %v1655
    %v1657 = vpop.f32.mrf.mxu0
    %1658 = vmatprep.mubr.bf16.mxu0 0
    %1659 = vmatmul.mubr.bf16.gmra.mxu0 %v1549
    %v1660 = vpop.f32.mrf.mxu0
    %v1661 = vadd.f32 0.0, %v1660
    %v1662 = vpop.f32.mrf.mxu0
    %v1663 = vpop.f32.mrf.mxu0
    %v1664 = vadd.f32 0.0, %v1663
    %v1665 = vpop.f32.mrf.mxu0
    %1666 = vmatprep.mubr.bf16.mxu0 0
    %1667 = vmatmul.mubr.bf16.gmra.mxu0 %v1552
    %v1668 = vpop.f32.mrf.mxu0
    %v1669 = vadd.f32 0.0, %v1668
    %v1670 = vpop.f32.mrf.mxu0
    %v1671 = vpop.f32.mrf.mxu0
    %v1672 = vadd.f32 0.0, %v1671
    %v1673 = vpop.f32.mrf.mxu0
    %1674 = vmatprep.mubr.bf16.mxu0 0
    %1675 = vmatmul.mubr.bf16.gmra.mxu0 %v1555
    %v1676 = vpop.f32.mrf.mxu0
    %v1677 = vadd.f32 0.0, %v1676
    %v1678 = vpop.f32.mrf.mxu0
    %v1679 = vpop.f32.mrf.mxu0
    %v1680 = vadd.f32 0.0, %v1679
    %v1681 = vpop.f32.mrf.mxu0
    %1682 = vmatprep.mubr.bf16.mxu0 0
    %1683 = vmatmul.mubr.bf16.gmra.mxu0 %v1558
    %v1684 = vpop.f32.mrf.mxu0
    %v1685 = vadd.f32 0.0, %v1684
    %v1686 = vpop.f32.mrf.mxu0
    %v1687 = vpop.f32.mrf.mxu0
    %v1688 = vadd.f32 0.0, %v1687
    %v1689 = vpop.f32.mrf.mxu0
    %1690 = vmatprep.mubr.bf16.mxu0 0
    %1691 = vmatmul.mubr.bf16.gmra.mxu0 %v1561
    %v1692 = vpop.f32.mrf.mxu0
    %v1693 = vadd.f32 0.0, %v1692
    %v1694 = vpop.f32.mrf.mxu0
    %v1695 = vpop.f32.mrf.mxu0
    %v1696 = vadd.f32 0.0, %v1695
    %v1697 = vpop.f32.mrf.mxu0
    %1698 = vmatprep.mubr.bf16.mxu0 0
    %1699 = vmatmul.mubr.bf16.gmra.mxu0 %v1564
    %v1700 = vpop.f32.mrf.mxu0
    %v1701 = vadd.f32 0.0, %v1700
    %v1702 = vpop.f32.mrf.mxu0
    %v1703 = vpop.f32.mrf.mxu0
    %v1704 = vadd.f32 0.0, %v1703
    %v1705 = vpop.f32.mrf.mxu0
    %1706 = vmatprep.mubr.bf16.mxu0 0
    %1707 = vmatmul.mubr.bf16.gmra.mxu0 %v1567
    %v1708 = vpop.f32.mrf.mxu0
    %v1709 = vadd.f32 0.0, %v1708
    %v1710 = vpop.f32.mrf.mxu0
    %v1711 = vpop.f32.mrf.mxu0
    %v1712 = vadd.f32 0.0, %v1711
    %v1713 = vpop.f32.mrf.mxu0
    %1714 = vmatprep.mubr.bf16.mxu0 0
    %1715 = vmatmul.mubr.bf16.gmra.mxu0 %v1570
    %v1716 = vpop.f32.mrf.mxu0
    %v1717 = vadd.f32 0.0, %v1716
    %v1718 = vpop.f32.mrf.mxu0
    %v1719 = vpop.f32.mrf.mxu0
    %v1720 = vadd.f32 0.0, %v1719
    %v1721 = vpop.f32.mrf.mxu0
    %1722 = vmatprep.mubr.bf16.mxu0 0
    %1723 = vmatmul.mubr.bf16.gmra.mxu0 %v1573
    %v1724 = vpop.f32.mrf.mxu0
    %v1725 = vadd.f32 0.0, %v1724
    %v1726 = vpop.f32.mrf.mxu0
    %v1727 = vpop.f32.mrf.mxu0
    %v1728 = vadd.f32 0.0, %v1727
    %v1729 = vpop.f32.mrf.mxu0
    %1730 = vmatprep.mubr.bf16.mxu0 0
    %1731 = vmatmul.mubr.bf16.gmra.mxu0 %v1576
    %v1732 = vpop.f32.mrf.mxu0
    %v1733 = vadd.f32 0.0, %v1732
    %v1734 = vpop.f32.mrf.mxu0
    %v1735 = vpop.f32.mrf.mxu0
    %v1736 = vadd.f32 0.0, %v1735
    %v1737 = vpop.f32.mrf.mxu0
    %1738 = vdwg.mxu0
    %v1739 = vadd.f32 %v1030, %v1613
    %v1740 = vadd.f32 %v1031, %v1616
    %v1741 = vadd.f32 %v1032, %v1621
    %v1742 = vadd.f32 %v1033, %v1624
    %v1743 = vadd.f32 %v1034, %v1629
    %v1744 = vadd.f32 %v1035, %v1632
    %v1745 = vadd.f32 %v1036, %v1637
    %v1746 = vadd.f32 %v1037, %v1640
    %v1747 = vadd.f32 %v1038, %v1645
    %v1748 = vadd.f32 %v1039, %v1648
    %v1749 = vadd.f32 %v1040, %v1653
    %v1750 = vadd.f32 %v1041, %v1656
    %v1751 = vadd.f32 %v1042, %v1661
    %v1752 = vadd.f32 %v1043, %v1664
    %v1753 = vadd.f32 %v1044, %v1669
    %v1754 = vadd.f32 %v1045, %v1672
    %v1755 = vadd.f32 %v1046, %v1677
    %v1756 = vadd.f32 %v1047, %v1680
    %v1757 = vadd.f32 %v1048, %v1685
    %v1758 = vadd.f32 %v1049, %v1688
    %v1759 = vadd.f32 %v1050, %v1693
    %v1760 = vadd.f32 %v1051, %v1696
    %v1761 = vadd.f32 %v1052, %v1701
    %v1762 = vadd.f32 %v1053, %v1704
    %v1763 = vadd.f32 %v1054, %v1709
    %v1764 = vadd.f32 %v1055, %v1712
    %v1765 = vadd.f32 %v1056, %v1717
    %v1766 = vadd.f32 %v1057, %v1720
    %v1767 = vadd.f32 %v1058, %v1725
    %v1768 = vadd.f32 %v1059, %v1728
    %v1769 = vadd.f32 %v1060, %v1733
    %v1770 = vadd.f32 %v1061, %v1736
    %v1771 = vmax.f32 %v1739, 0.0
    %v1772 = vmax.f32 %v1740, 0.0
    %v1773 = vmax.f32 %v1741, 0.0
    %v1774 = vmax.f32 %v1742, 0.0
    %v1775 = vmax.f32 %v1743, 0.0
    %v1776 = vmax.f32 %v1744, 0.0
    %v1777 = vmax.f32 %v1745, 0.0
    %v1778 = vmax.f32 %v1746, 0.0
    %v1779 = vmax.f32 %v1747, 0.0
    %v1780 = vmax.f32 %v1748, 0.0
    %v1781 = vmax.f32 %v1749, 0.0
    %v1782 = vmax.f32 %v1750, 0.0
    %v1783 = vmax.f32 %v1751, 0.0
    %v1784 = vmax.f32 %v1752, 0.0
    %v1785 = vmax.f32 %v1753, 0.0
    %v1786 = vmax.f32 %v1754, 0.0
    %v1787 = vmax.f32 %v1755, 0.0
    %v1788 = vmax.f32 %v1756, 0.0
    %v1789 = vmax.f32 %v1757, 0.0
    %v1790 = vmax.f32 %v1758, 0.0
    %v1791 = vmax.f32 %v1759, 0.0
    %v1792 = vmax.f32 %v1760, 0.0
    %v1793 = vmax.f32 %v1761, 0.0
    %v1794 = vmax.f32 %v1762, 0.0
    %v1795 = vmax.f32 %v1763, 0.0
    %v1796 = vmax.f32 %v1764, 0.0
    %v1797 = vmax.f32 %v1765, 0.0
    %v1798 = vmax.f32 %v1766, 0.0
    %v1799 = vmax.f32 %v1767, 0.0
    %v1800 = vmax.f32 %v1768, 0.0
    %v1801 = vmax.f32 %v1769, 0.0
    %v1802 = vmax.f32 %v1770, 0.0
    %v1803 = vpack.c.bf16 %v1772, %v1771
    %v1804 = vpack.c.bf16 %v1774, %v1773
    %v1805 = vpack.c.bf16 %v1776, %v1775
    %v1806 = vpack.c.bf16 %v1778, %v1777
    %v1807 = vpack.c.bf16 %v1780, %v1779
    %v1808 = vpack.c.bf16 %v1782, %v1781
    %v1809 = vpack.c.bf16 %v1784, %v1783
    %v1810 = vpack.c.bf16 %v1786, %v1785
    %v1811 = vpack.c.bf16 %v1788, %v1787
    %v1812 = vpack.c.bf16 %v1790, %v1789
    %v1813 = vpack.c.bf16 %v1792, %v1791
    %v1814 = vpack.c.bf16 %v1794, %v1793
    %v1815 = vpack.c.bf16 %v1796, %v1795
    %v1816 = vpack.c.bf16 %v1798, %v1797
    %v1817 = vpack.c.bf16 %v1800, %v1799
    %v1818 = vpack.c.bf16 %v1802, %v1801
    %v1835 = vunpack.c.l.b16 %v1803
    %v1836 = vunpack.c.h.b16 %v1803
    %v1837 = vunpack.c.l.b16 %v1804
    %v1838 = vunpack.c.h.b16 %v1804
    %v1839 = vunpack.c.l.b16 %v1805
    %v1840 = vunpack.c.h.b16 %v1805
    %v1841 = vunpack.c.l.b16 %v1806
    %v1842 = vunpack.c.h.b16 %v1806
    %v1843 = vunpack.c.l.b16 %v1807
    %v1844 = vunpack.c.h.b16 %v1807
    %v1845 = vunpack.c.l.b16 %v1808
    %v1846 = vunpack.c.h.b16 %v1808
    %v1847 = vunpack.c.l.b16 %v1809
    %v1848 = vunpack.c.h.b16 %v1809
    %v1849 = vunpack.c.l.b16 %v1810
    %v1850 = vunpack.c.h.b16 %v1810
    %v1851 = vunpack.c.l.b16 %v1811
    %v1852 = vunpack.c.h.b16 %v1811
    %v1853 = vunpack.c.l.b16 %v1812
    %v1854 = vunpack.c.h.b16 %v1812
    %v1855 = vunpack.c.l.b16 %v1813
    %v1856 = vunpack.c.h.b16 %v1813
    %v1857 = vunpack.c.l.b16 %v1814
    %v1858 = vunpack.c.h.b16 %v1814
    %v1859 = vunpack.c.l.b16 %v1815
    %v1860 = vunpack.c.h.b16 %v1815
    %v1861 = vunpack.c.l.b16 %v1816
    %v1862 = vunpack.c.h.b16 %v1816
    %v1863 = vunpack.c.l.b16 %v1817
    %v1864 = vunpack.c.h.b16 %v1817
    %v1865 = vunpack.c.l.b16 %v1818
    %v1866 = vunpack.c.h.b16 %v1818
    %v1867 = vpack.c.b16 %v1835, %v1835
    %v1868 = vpack.c.b16 %v1836, %v1836
    %v1869 = vpack.c.b16 %v1837, %v1837
    %v1870 = vpack.c.b16 %v1838, %v1838
    %v1871 = vpack.c.b16 %v1839, %v1839
    %v1872 = vpack.c.b16 %v1840, %v1840
    %v1873 = vpack.c.b16 %v1841, %v1841
    %v1874 = vpack.c.b16 %v1842, %v1842
    %v1875 = vpack.c.b16 %v1843, %v1843
    %v1876 = vpack.c.b16 %v1844, %v1844
    %v1877 = vpack.c.b16 %v1845, %v1845
    %v1878 = vpack.c.b16 %v1846, %v1846
    %v1879 = vpack.c.b16 %v1847, %v1847
    %v1880 = vpack.c.b16 %v1848, %v1848
    %v1881 = vpack.c.b16 %v1849, %v1849
    %v1882 = vpack.c.b16 %v1850, %v1850
    %v1883 = vpack.c.b16 %v1851, %v1851
    %v1884 = vpack.c.b16 %v1852, %v1852
    %v1885 = vpack.c.b16 %v1853, %v1853
    %v1886 = vpack.c.b16 %v1854, %v1854
    %v1887 = vpack.c.b16 %v1855, %v1855
    %v1888 = vpack.c.b16 %v1856, %v1856
    %v1889 = vpack.c.b16 %v1857, %v1857
    %v1890 = vpack.c.b16 %v1858, %v1858
    %v1891 = vpack.c.b16 %v1859, %v1859
    %v1892 = vpack.c.b16 %v1860, %v1860
    %v1893 = vpack.c.b16 %v1861, %v1861
    %v1894 = vpack.c.b16 %v1862, %v1862
    %v1895 = vpack.c.b16 %v1863, %v1863
    %v1896 = vpack.c.b16 %v1864, %v1864
    %v1897 = vpack.c.b16 %v1865, %v1865
    %v1898 = vpack.c.b16 %v1866, %v1866
    %1931 = vst [vmem:[#allocation2] sm:$0xf] %v1867
    %1932 = vst [vmem:[#allocation2 + $0x4] sm:$0xf] %v1868
    %1933 = vst [vmem:[#allocation2 + $0x8] sm:$0xf] %v1869
    %1934 = vst [vmem:[#allocation2 + $0xc] sm:$0xf] %v1870
    %1935 = vst [vmem:[#allocation2 + $0x10] sm:$0xf] %v1871
    %1936 = vst [vmem:[#allocation2 + $0x14] sm:$0xf] %v1872
    %1937 = vst [vmem:[#allocation2 + $0x18] sm:$0xf] %v1873
    %1938 = vst [vmem:[#allocation2 + $0x1c] sm:$0xf] %v1874
    %1939 = vst [vmem:[#allocation2 + $0x20] sm:$0xf] %v1875
    %1940 = vst [vmem:[#allocation2 + $0x24] sm:$0xf] %v1876
    %1941 = vst [vmem:[#allocation2 + $0x28] sm:$0xf] %v1877
    %1942 = vst [vmem:[#allocation2 + $0x2c] sm:$0xf] %v1878
    %1943 = vst [vmem:[#allocation2 + $0x30] sm:$0xf] %v1879
    %1944 = vst [vmem:[#allocation2 + $0x34] sm:$0xf] %v1880
    %1945 = vst [vmem:[#allocation2 + $0x38] sm:$0xf] %v1881
    %1946 = vst [vmem:[#allocation2 + $0x3c] sm:$0xf] %v1882
    %1947 = vst [vmem:[#allocation2 + $0x40] sm:$0xf] %v1883
    %1948 = vst [vmem:[#allocation2 + $0x44] sm:$0xf] %v1884
    %1949 = vst [vmem:[#allocation2 + $0x48] sm:$0xf] %v1885
    %1950 = vst [vmem:[#allocation2 + $0x4c] sm:$0xf] %v1886
    %1951 = vst [vmem:[#allocation2 + $0x50] sm:$0xf] %v1887
    %1952 = vst [vmem:[#allocation2 + $0x54] sm:$0xf] %v1888
    %1953 = vst [vmem:[#allocation2 + $0x58] sm:$0xf] %v1889
    %1954 = vst [vmem:[#allocation2 + $0x5c] sm:$0xf] %v1890
    %1955 = vst [vmem:[#allocation2 + $0x60] sm:$0xf] %v1891
    %1956 = vst [vmem:[#allocation2 + $0x64] sm:$0xf] %v1892
    %1957 = vst [vmem:[#allocation2 + $0x68] sm:$0xf] %v1893
    %1958 = vst [vmem:[#allocation2 + $0x6c] sm:$0xf] %v1894
    %1959 = vst [vmem:[#allocation2 + $0x70] sm:$0xf] %v1895
    %1960 = vst [vmem:[#allocation2 + $0x74] sm:$0xf] %v1896
    %1961 = vst [vmem:[#allocation2 + $0x78] sm:$0xf] %v1897
    %1962 = vst [vmem:[#allocation2 + $0x7c] sm:$0xf] %v1898
    // Predicated region
    $region26: #{tpu_custom_call.1} parent=1 // pred_check
      _
    $region27: #{tpu_custom_call.1} parent=1 // pred_check_branch
      %1964 = sbr.rel (0) target = $region29
    $region28: #{tpu_custom_call.1} parent=1 // pred_region
      %s1966 = ssub.s32 2048, 2048
      %1967 = vsyncadd [#allocation3], %s1966
      %s1968 = sshll.u32 [#allocation2], 4
      %s1969 = int_to_ptr.vmem [resolvable:$true] %s1968
      %1974 = dma.vmem_to_hbm [thread:$0]  %s1969, 2048, %s6, [#allocation3], 64, 64, 4
    $region29: #{tpu_custom_call.1} parent=1 // pred_fallthru
      _
    // Predicated region
    $region30: #{tpu_custom_call.1} parent=1 // pred_check
      _
    $region31: #{tpu_custom_call.1} parent=1 // pred_check_branch
      %1976 = sbr.rel (0) target = $region33
    $region32: #{tpu_custom_call.1} parent=1 // pred_region
      %1977 = dma.done [#allocation3], 2048
    $region33: #{tpu_custom_call.1} parent=1 // pred_fallthru
      _
    %1978 = vsyncpa [#allocation3], 1

</llo_original>
